<compile_context>
chip_gen: v7x
topology: tpu7x:2x2x1
jax: 0.10.0
libtpu: 0.0.40
codegen_flags: <defaults>
</compile_context>

<pallas_src>
import functools

import jax
import jax.numpy as jnp
from jax import lax
from jax.experimental import pallas as pl
from jax.experimental.pallas import tpu as pltpu


def _layernorm_ref(v, gamma, beta, eps=1e-6):
    # Matches the custom LayerNorm of the reference model: unbiased std (N-1),
    # eps added to std (not variance).
    n = v.shape[-1]
    mean = jnp.mean(v, axis=-1, keepdims=True)
    var = jnp.sum((v - mean) ** 2, axis=-1, keepdims=True) / (n - 1)
    return gamma * (v - mean) / (jnp.sqrt(var) + eps) + beta


def _layernorm_fast(v, gamma, beta, eps=1e-6):
    # Same math, but the divide goes to the EUP via approx reciprocal.
    n = v.shape[-1]
    mean = jnp.mean(v, axis=-1, keepdims=True)
    c = v - mean
    var = jnp.sum(c * c, axis=-1, keepdims=True) * (1.0 / (n - 1))
    inv = pl.reciprocal(jnp.sqrt(var) + eps, approx=True)
    return gamma * (c * inv) + beta


def decoder_block_kernel(xx_ref, mask_ref, keep_prev_ref, keep_next_ref,
                         w_emb_ref, g_mha_ref, b_mha_ref,
                         wqkv_ref, wo_ref,
                         g_ffn_ref, b_ffn_ref,
                         wc1_ref, bc1_ref, wc2_ref, bc2_ref,
                         g_out_ref, b_out_ref,
                         out_ref,
                         *, batch, length, num_heads, key_depth, value_depth):
    f32 = jnp.float32
    bf16 = jnp.bfloat16
    R = batch * length

    # ---- embedding projection: both streams in one (2R,E)@(E,H) matmul ----
    xx = jnp.dot(xx_ref[...], w_emb_ref[...], preferred_element_type=f32)  # (2R,H) f32

    # ---- shared pre-attention LayerNorm on the stacked slab ----
    xx_n = _layernorm_fast(xx, g_mha_ref[...], b_mha_ref[...])

    x = xx[:R]                          # stream-0 pre-norm (residual basis)
    H = x.shape[-1]

    # ---- fused q/k/v projection: ONE matmul on the stacked slab -----------
    # wqkv = [Wq*scale | Wk | Wv]; q from stream-0 rows, k/v from stream-1 rows.
    qkv = jnp.dot(xx_n.astype(bf16), wqkv_ref[...],
                  preferred_element_type=f32)                               # (2R, 2DK+DV)
    q = qkv[:R, :key_depth].astype(bf16)                                    # (R, DK)
    k = qkv[R:, key_depth:2 * key_depth].astype(bf16)                       # (R, DK)
    v = qkv[R:, 2 * key_depth:].astype(bf16)                                # (R, DV)

    wo = wo_ref[...]                    # (DV,H) bf16
    mask_full = mask_ref[...]           # (R,R) block-diagonal additive mask (hoisted)

    dkh = key_depth // num_heads
    dvh = value_depth // num_heads
    attn = jnp.zeros((R, H), f32)
    for h in range(num_heads):          # small static unroll over heads
        qh = q[:, h * dkh:(h + 1) * dkh]
        kh = k[:, h * dkh:(h + 1) * dkh]
        vh = v[:, h * dvh:(h + 1) * dvh]
        logits = lax.dot_general(qh, kh, (((1,), (1,)), ((), ())),
                                 preferred_element_type=f32)                # (R,R)
        logits = logits + mask_full
        logits = logits - jnp.max(logits, axis=-1, keepdims=True)
        e = jnp.exp(logits)
        p = e * pl.reciprocal(jnp.sum(e, axis=-1, keepdims=True), approx=True)
        ctx = jnp.dot(p.astype(bf16), vh, preferred_element_type=f32)       # (R,dvh)
        # accumulate output projection per head (no lane concatenate)
        attn = attn + jnp.dot(ctx.astype(bf16), wo[h * dvh:(h + 1) * dvh, :],
                              preferred_element_type=f32)                   # (R,H)

    x = x + attn                        # residual (layer dropout = identity at eval)

    # ---- position-wise FFN: two k=3 "same" convs, each fused to ONE matmul ----
    keep_prev = keep_prev_ref[...]      # (R,1) 0/1: zero the t-1 tap at sequence starts
    keep_next = keep_next_ref[...]      # (R,1) 0/1: zero the t+1 tap at sequence ends

    def shifted3(t):
        # (R,C) -> (R,3C) = [t[i-1] | t[i] | t[i+1]] with per-sequence zero padding.
        C = t.shape[-1]
        z = jnp.zeros((1, C), f32)
        t_prev = jnp.concatenate([z, t[:R - 1]], axis=0) * keep_prev
        t_next = jnp.concatenate([t[1:], z], axis=0) * keep_next
        return jnp.concatenate([t_prev, t, t_next], axis=-1)

    xn = _layernorm_fast(x, g_ffn_ref[...], b_ffn_ref[...])                 # (R,H)
    h1 = bc1_ref[...] + jnp.dot(shifted3(xn).astype(bf16), wc1_ref[...],
                                preferred_element_type=f32)                 # (R,F)
    h1 = jnp.maximum(h1, 0.0)           # ReLU (relu_dropout = identity)
    y_ffn = bc2_ref[...] + jnp.dot(shifted3(h1).astype(bf16), wc2_ref[...],
                                   preferred_element_type=f32)              # (R,H)
    x = x + y_ffn                       # residual

    # ---- final LayerNorm + lane-dense (128-lane) store ----
    y = _layernorm_fast(x, g_out_ref[...], b_out_ref[...])
    pad = out_ref.shape[-1] - H
    if pad:
        y = jnp.concatenate([y, jnp.zeros((R, pad), f32)], axis=-1)
    out_ref[...] = y.astype(out_ref.dtype)


def decoder_forward(inputs, inputs1, mask_add, params,
                    *, num_heads, key_depth, value_depth):
    B, L, E = inputs.shape
    H = params["w_emb"].shape[1]
    F = params["wc1"].shape[2]
    R = B * L
    dkh = key_depth // num_heads
    out_lanes = ((H + 127) // 128) * 128
    bf16 = jnp.bfloat16

    # ---- host-side operand prep (cheap, one-time layout plumbing) ----
    # fold batch into rows and stack the two streams for the shared embedding/LN
    xx = jnp.concatenate([inputs.reshape(R, E), inputs1.reshape(R, E)],
                         axis=0).astype(bf16)                               # (2R,E)

    # block-diagonal additive attention mask over the flattened batch:
    # full[bq*L+i, bk*L+j] = key_mask[bk, j] if bq == bk else -1e18
    key_add = mask_add[:, 0, :]                                             # (B,L)
    same_b = (jnp.arange(B)[:, None, None, None] ==
              jnp.arange(B)[None, None, :, None])                           # (B,1,B,1)
    mask_full = jnp.where(same_b,
                          jnp.broadcast_to(key_add[None, None, :, :], (B, L, B, L)),
                          jnp.float32(-1e18)).reshape(R, R).astype(jnp.float32)

    # per-row keep masks for the fused conv taps (zero taps crossing batch bounds)
    pos = jnp.arange(R) % L
    keep_prev = (pos != 0).astype(jnp.float32).reshape(R, 1)
    keep_next = (pos != L - 1).astype(jnp.float32).reshape(R, 1)

    # weights: bf16 MXU operands, attention scale folded into Wq, Wq|Wk|Wv
    # fused into one projection matrix, conv taps fused into (3C_in, C_out)
    w_emb = params["w_emb"].astype(bf16)
    wqkv = jnp.concatenate([params["wq"] * (dkh ** -0.5),
                            params["wk"], params["wv"]], axis=1).astype(bf16)
    wo = params["wo"].astype(bf16)
    wc1 = params["wc1"].reshape(3 * H, F).astype(bf16)
    wc2 = params["wc2"].reshape(3 * F, H).astype(bf16)

    kernel = functools.partial(decoder_block_kernel,
                               batch=B, length=L, num_heads=num_heads,
                               key_depth=key_depth, value_depth=value_depth)

    def full_spec(shape):
        nd = len(shape)
        return pl.BlockSpec(shape, lambda i, _nd=nd: (0,) * _nd)

    args = [xx, mask_full, keep_prev, keep_next,
            w_emb, params["g_mha"], params["b_mha"],
            wqkv, wo,
            params["g_ffn"], params["b_ffn"],
            wc1, params["bc1"], wc2, params["bc2"],
            params["g_out"], params["b_out"]]

    # Single grid step: whole batch per step (B*L rows).  For production batch
    # sizes, chunk the batch across a leading "parallel" grid axis instead.
    fn = pl.pallas_call(
        kernel,
        out_shape=jax.ShapeDtypeStruct((R, out_lanes), jnp.float32),
        grid=(1,),
        in_specs=[full_spec(a.shape) for a in args],
        out_specs=full_spec((R, out_lanes)),
        compiler_params=pltpu.CompilerParams(
            dimension_semantics=("arbitrary",)),
    )
    out = fn(*args)
    return out[:, :H].reshape(B, L, H)


def decoder_reference(inputs, inputs1, mask_add, params,
                      *, num_heads, key_depth, value_depth):
    """Plain-JAX (f32) reference mirroring the PyTorch forward, for verification."""
    x = jnp.einsum("ble,eh->blh", inputs, params["w_emb"])
    x1 = jnp.einsum("ble,eh->blh", inputs1, params["w_emb"])
    xn = _layernorm_ref(x, params["g_mha"], params["b_mha"])
    x1n = _layernorm_ref(x1, params["g_mha"], params["b_mha"])

    B, L, H = x.shape
    dkh = key_depth // num_heads
    dvh = value_depth // num_heads
    q = (xn @ params["wq"]).reshape(B, L, num_heads, dkh) * (dkh ** -0.5)
    k = (x1n @ params["wk"]).reshape(B, L, num_heads, dkh)
    v = (x1n @ params["wv"]).reshape(B, L, num_heads, dvh)
    logits = jnp.einsum("bqhd,bkhd->bhqk", q, k) + mask_add[:, :, None, :]
    w = jax.nn.softmax(logits, axis=-1)
    ctx = jnp.einsum("bhqk,bkhd->bqhd", w, v).reshape(B, L, value_depth)
    x = x + ctx @ params["wo"]

    xn = _layernorm_ref(x, params["g_ffn"], params["b_ffn"])
    xp = jnp.pad(xn, ((0, 0), (1, 1), (0, 0)))
    h1 = params["bc1"] + sum(jnp.einsum("blh,hf->blf", xp[:, s:s + L], params["wc1"][s])
                             for s in range(3))
    h1 = jnp.maximum(h1, 0.0)
    hp = jnp.pad(h1, ((0, 0), (1, 1), (0, 0)))
    y = params["bc2"] + sum(jnp.einsum("blf,fh->blh", hp[:, s:s + L], params["wc2"][s])
                            for s in range(3))
    x = x + y
    return _layernorm_ref(x, params["g_out"], params["b_out"])


if __name__ == "__main__":
    B, L = 2, 8
    E = 32            # embedding_size
    H = 32            # hidden_size
    NH = 2            # num_heads
    DK = 32           # total_key_depth (divisible by num_heads)
    DV = 32           # total_value_depth
    FS = 64           # filter_size

    key = jax.random.PRNGKey(0)
    ks = jax.random.split(key, 12)

    def rnd(k, shape, scale=0.1):
        return (scale * jax.random.normal(k, shape)).astype(jnp.float32)

    params = {
        "w_emb": rnd(ks[0], (E, H)),            # embedding_proj (no bias), pre-transposed
        "g_mha": jnp.ones((1, H), jnp.float32),
        "b_mha": jnp.zeros((1, H), jnp.float32),
        "wq": rnd(ks[1], (H, DK)),
        "wk": rnd(ks[2], (H, DK)),
        "wv": rnd(ks[3], (H, DV)),
        "wo": rnd(ks[4], (DV, H)),
        "g_ffn": jnp.ones((1, H), jnp.float32),
        "b_ffn": jnp.zeros((1, H), jnp.float32),
        # PyTorch Conv1d weights are (out, in, k); pre-transposed here to (k, in, out).
        "wc1": rnd(ks[5], (3, H, FS)),
        "bc1": rnd(ks[6], (1, FS)),
        "wc2": rnd(ks[7], (3, FS, H)),
        "bc2": rnd(ks[8], (1, H)),
        "g_out": jnp.ones((1, H), jnp.float32),
        "b_out": jnp.zeros((1, H), jnp.float32),
    }

    inputs = rnd(ks[9], (B, L, E), scale=1.0)
    inputs1 = rnd(ks[10], (B, L, E), scale=1.0)

    # mask: True means "masked out" (PAD position of the key stream); mask the
    # last key position of batch element 1.  Converted to additive form.
    mask_bool = jnp.zeros((B, 1, L), dtype=bool).at[1, 0, L - 1].set(True)
    mask_add = jnp.where(mask_bool, jnp.float32(-1e18), jnp.float32(0.0))

    # TODO(synk): dropout layers / universal-ACT branch are inference no-ops
    # (eval mode) and are intentionally not emitted.
    # TODO(synk): the Decoder wrapper's sinusoidal timing/position signals are
    # a host-side elementwise add; omitted to match the validated configuration.

    out = decoder_forward(inputs, inputs1, mask_add, params,
                          num_heads=NH, key_depth=DK, value_depth=DV)
    out = jax.block_until_ready(out)

    ref = decoder_reference(inputs, inputs1, mask_add, params,
                            num_heads=NH, key_depth=DK, value_depth=DV)
    assert out.shape == (B, L, H)
    err = float(jnp.max(jnp.abs(out - ref)))
    assert jnp.allclose(out, ref, atol=5e-2, rtol=5e-2), err

    print("KERNEL_OK")
</pallas_src>

<mosaic_0001>
module attributes {stable_mosaic.version = 11 : i64} {
  func.func @decoder_block_kernel(%arg0: i32, %arg1: memref<32x32xbf16, #tpu.memory_space<vmem>>, %arg2: memref<16x16xf32, #tpu.memory_space<vmem>>, %arg3: memref<16x1xf32, #tpu.memory_space<vmem>>, %arg4: memref<16x1xf32, #tpu.memory_space<vmem>>, %arg5: memref<32x32xbf16, #tpu.memory_space<vmem>>, %arg6: memref<1x32xf32, #tpu.memory_space<vmem>>, %arg7: memref<1x32xf32, #tpu.memory_space<vmem>>, %arg8: memref<32x96xbf16, #tpu.memory_space<vmem>>, %arg9: memref<32x32xbf16, #tpu.memory_space<vmem>>, %arg10: memref<1x32xf32, #tpu.memory_space<vmem>>, %arg11: memref<1x32xf32, #tpu.memory_space<vmem>>, %arg12: memref<96x64xbf16, #tpu.memory_space<vmem>>, %arg13: memref<1x64xf32, #tpu.memory_space<vmem>>, %arg14: memref<192x32xbf16, #tpu.memory_space<vmem>>, %arg15: memref<1x32xf32, #tpu.memory_space<vmem>>, %arg16: memref<1x32xf32, #tpu.memory_space<vmem>>, %arg17: memref<1x32xf32, #tpu.memory_space<vmem>>, %arg18: memref<16x128xf32, #tpu.memory_space<vmem>>) attributes {dimension_semantics = [#tpu.dimension_semantics<arbitrary>], iteration_bounds = array<i64: 1>, scalar_prefetch = 0 : i64, scratch_operands = 0 : i64, tpu.core_type = #tpu.core_type<tc>, window_params = [{pipeline_mode = #tpu.pipeline_mode<synchronous>, transform_indices = @transform_0, window_bounds = array<i64: 32, 32>}, {pipeline_mode = #tpu.pipeline_mode<synchronous>, transform_indices = @transform_1, window_bounds = array<i64: 16, 16>}, {pipeline_mode = #tpu.pipeline_mode<synchronous>, transform_indices = @transform_2, window_bounds = array<i64: 16, 1>}, {pipeline_mode = #tpu.pipeline_mode<synchronous>, transform_indices = @transform_3, window_bounds = array<i64: 16, 1>}, {pipeline_mode = #tpu.pipeline_mode<synchronous>, transform_indices = @transform_4, window_bounds = array<i64: 32, 32>}, {pipeline_mode = #tpu.pipeline_mode<synchronous>, transform_indices = @transform_5, window_bounds = array<i64: 1, 32>}, {pipeline_mode = #tpu.pipeline_mode<synchronous>, transform_indices = @transform_6, window_bounds = array<i64: 1, 32>}, {pipeline_mode = #tpu.pipeline_mode<synchronous>, transform_indices = @transform_7, window_bounds = array<i64: 32, 96>}, {pipeline_mode = #tpu.pipeline_mode<synchronous>, transform_indices = @transform_8, window_bounds = array<i64: 32, 32>}, {pipeline_mode = #tpu.pipeline_mode<synchronous>, transform_indices = @transform_9, window_bounds = array<i64: 1, 32>}, {pipeline_mode = #tpu.pipeline_mode<synchronous>, transform_indices = @transform_10, window_bounds = array<i64: 1, 32>}, {pipeline_mode = #tpu.pipeline_mode<synchronous>, transform_indices = @transform_11, window_bounds = array<i64: 96, 64>}, {pipeline_mode = #tpu.pipeline_mode<synchronous>, transform_indices = @transform_12, window_bounds = array<i64: 1, 64>}, {pipeline_mode = #tpu.pipeline_mode<synchronous>, transform_indices = @transform_13, window_bounds = array<i64: 192, 32>}, {pipeline_mode = #tpu.pipeline_mode<synchronous>, transform_indices = @transform_14, window_bounds = array<i64: 1, 32>}, {pipeline_mode = #tpu.pipeline_mode<synchronous>, transform_indices = @transform_15, window_bounds = array<i64: 1, 32>}, {pipeline_mode = #tpu.pipeline_mode<synchronous>, transform_indices = @transform_16, window_bounds = array<i64: 1, 32>}, {pipeline_mode = #tpu.pipeline_mode<synchronous>, transform_indices = @transform_17, window_bounds = array<i64: 16, 128>}]} {
    %c0 = arith.constant 0 : index
    %c0_0 = arith.constant 0 : index
    %0 = vector.load %arg1[%c0, %c0_0] : memref<32x32xbf16, #tpu.memory_space<vmem>>, vector<32x32xbf16>
    %c0_1 = arith.constant 0 : index
    %c0_2 = arith.constant 0 : index
    %1 = vector.load %arg5[%c0_1, %c0_2] : memref<32x32xbf16, #tpu.memory_space<vmem>>, vector<32x32xbf16>
    %cst = arith.constant dense<0.000000e+00> : vector<32x32xf32>
    %2 = tpu.matmul %0, %1, %cst {dimension_numbers = #tpu.dot_dimension_numbers<[1], [0], [0], [1], [0, 0, 1, 1], [], []>} : vector<32x32xbf16>, vector<32x32xbf16>, vector<32x32xf32> -> vector<32x32xf32>
    %c0_3 = arith.constant 0 : index
    %c0_4 = arith.constant 0 : index
    %3 = vector.load %arg6[%c0_3, %c0_4] : memref<1x32xf32, #tpu.memory_space<vmem>>, vector<1x32xf32>
    %c0_5 = arith.constant 0 : index
    %c0_6 = arith.constant 0 : index
    %4 = vector.load %arg7[%c0_5, %c0_6] : memref<1x32xf32, #tpu.memory_space<vmem>>, vector<1x32xf32>
    %cst_7 = arith.constant dense<0.000000e+00> : vector<32xf32>
    %5 = vector.multi_reduction <add>, %2, %cst_7 [1] : vector<32x32xf32> to vector<32xf32>
    %6 = vector.shape_cast %5 : vector<32xf32> to vector<32x1xf32>
    %cst_8 = arith.constant 3.200000e+01 : f32
    %7 = vector.broadcast %cst_8 : f32 to vector<32x1xf32>
    %8 = arith.divf %6, %7 : vector<32x1xf32>
    %9 = vector.broadcast %8 : vector<32x1xf32> to vector<32x32xf32>
    %10 = arith.subf %2, %9 : vector<32x32xf32>
    %11 = arith.mulf %10, %10 : vector<32x32xf32>
    %cst_9 = arith.constant dense<0.000000e+00> : vector<32xf32>
    %12 = vector.multi_reduction <add>, %11, %cst_9 [1] : vector<32x32xf32> to vector<32xf32>
    %13 = vector.shape_cast %12 : vector<32xf32> to vector<32x1xf32>
    %cst_10 = arith.constant 0.0322580636 : f32
    %14 = vector.broadcast %cst_10 : f32 to vector<32x1xf32>
    %15 = arith.mulf %13, %14 : vector<32x1xf32>
    %16 = math.sqrt %15 : vector<32x1xf32>
    %cst_11 = arith.constant 9.99999997E-7 : f32
    %17 = vector.broadcast %cst_11 : f32 to vector<32x1xf32>
    %18 = arith.addf %16, %17 : vector<32x1xf32>
    %19 = tpu.reciprocal %18 {approx = true} : vector<32x1xf32> -> vector<32x1xf32>
    %20 = vector.broadcast %19 : vector<32x1xf32> to vector<32x32xf32>
    %21 = arith.mulf %10, %20 : vector<32x32xf32>
    %22 = vector.broadcast %3 : vector<1x32xf32> to vector<32x32xf32>
    %23 = arith.mulf %22, %21 : vector<32x32xf32>
    %24 = vector.broadcast %4 : vector<1x32xf32> to vector<32x32xf32>
    %25 = arith.addf %23, %24 : vector<32x32xf32>
    %26 = vector.extract_strided_slice %2 {offsets = [0, 0], sizes = [16, 32], strides = [1, 1]} : vector<32x32xf32> to vector<16x32xf32>
    %27 = arith.truncf %25 : vector<32x32xf32> to vector<32x32xbf16>
    %c0_12 = arith.constant 0 : index
    %c0_13 = arith.constant 0 : index
    %28 = vector.load %arg8[%c0_12, %c0_13] : memref<32x96xbf16, #tpu.memory_space<vmem>>, vector<32x96xbf16>
    %cst_14 = arith.constant dense<0.000000e+00> : vector<32x96xf32>
    %29 = tpu.matmul %27, %28, %cst_14 {dimension_numbers = #tpu.dot_dimension_numbers<[1], [0], [0], [1], [0, 0, 1, 1], [], []>} : vector<32x32xbf16>, vector<32x96xbf16>, vector<32x96xf32> -> vector<32x96xf32>
    %30 = vector.extract_strided_slice %29 {offsets = [0, 0], sizes = [16, 32], strides = [1, 1]} : vector<32x96xf32> to vector<16x32xf32>
    %31 = arith.truncf %30 : vector<16x32xf32> to vector<16x32xbf16>
    %32 = vector.extract_strided_slice %29 {offsets = [16, 32], sizes = [16, 32], strides = [1, 1]} : vector<32x96xf32> to vector<16x32xf32>
    %33 = arith.truncf %32 : vector<16x32xf32> to vector<16x32xbf16>
    %34 = vector.extract_strided_slice %29 {offsets = [16, 64], sizes = [16, 32], strides = [1, 1]} : vector<32x96xf32> to vector<16x32xf32>
    %35 = arith.truncf %34 : vector<16x32xf32> to vector<16x32xbf16>
    %c0_15 = arith.constant 0 : index
    %c0_16 = arith.constant 0 : index
    %36 = vector.load %arg9[%c0_15, %c0_16] : memref<32x32xbf16, #tpu.memory_space<vmem>>, vector<32x32xbf16>
    %c0_17 = arith.constant 0 : index
    %c0_18 = arith.constant 0 : index
    %37 = vector.load %arg2[%c0_17, %c0_18] : memref<16x16xf32, #tpu.memory_space<vmem>>, vector<16x16xf32>
    %cst_19 = arith.constant 0.000000e+00 : f32
    %38 = vector.broadcast %cst_19 : f32 to vector<16x32xf32>
    %39 = vector.extract_strided_slice %31 {offsets = [0, 0], sizes = [16, 16], strides = [1, 1]} : vector<16x32xbf16> to vector<16x16xbf16>
    %40 = vector.extract_strided_slice %33 {offsets = [0, 0], sizes = [16, 16], strides = [1, 1]} : vector<16x32xbf16> to vector<16x16xbf16>
    %41 = vector.extract_strided_slice %35 {offsets = [0, 0], sizes = [16, 16], strides = [1, 1]} : vector<16x32xbf16> to vector<16x16xbf16>
    %cst_20 = arith.constant dense<0.000000e+00> : vector<16x16xf32>
    %42 = tpu.matmul %39, %40, %cst_20 {dimension_numbers = #tpu.dot_dimension_numbers<[1], [1], [0], [0], [0, 0, 1, 0], [], []>} : vector<16x16xbf16>, vector<16x16xbf16>, vector<16x16xf32> -> vector<16x16xf32>
    %43 = arith.addf %42, %37 : vector<16x16xf32>
    %cst_21 = arith.constant dense<0xFF800000> : vector<16xf32>
    %44 = vector.multi_reduction <maximumf>, %43, %cst_21 [1] : vector<16x16xf32> to vector<16xf32>
    %45 = vector.shape_cast %44 : vector<16xf32> to vector<16x1xf32>
    %46 = vector.broadcast %45 : vector<16x1xf32> to vector<16x16xf32>
    %47 = arith.subf %43, %46 : vector<16x16xf32>
    %48 = math.exp %47 : vector<16x16xf32>
    %cst_22 = arith.constant dense<0.000000e+00> : vector<16xf32>
    %49 = vector.multi_reduction <add>, %48, %cst_22 [1] : vector<16x16xf32> to vector<16xf32>
    %50 = vector.shape_cast %49 : vector<16xf32> to vector<16x1xf32>
    %51 = tpu.reciprocal %50 {approx = true} : vector<16x1xf32> -> vector<16x1xf32>
    %52 = vector.broadcast %51 : vector<16x1xf32> to vector<16x16xf32>
    %53 = arith.mulf %48, %52 : vector<16x16xf32>
    %54 = arith.truncf %53 : vector<16x16xf32> to vector<16x16xbf16>
    %cst_23 = arith.constant dense<0.000000e+00> : vector<16x16xf32>
    %55 = tpu.matmul %54, %41, %cst_23 {dimension_numbers = #tpu.dot_dimension_numbers<[1], [0], [0], [1], [0, 0, 1, 1], [], []>} : vector<16x16xbf16>, vector<16x16xbf16>, vector<16x16xf32> -> vector<16x16xf32>
    %56 = arith.truncf %55 : vector<16x16xf32> to vector<16x16xbf16>
    %57 = vector.extract_strided_slice %36 {offsets = [0, 0], sizes = [16, 32], strides = [1, 1]} : vector<32x32xbf16> to vector<16x32xbf16>
    %cst_24 = arith.constant dense<0.000000e+00> : vector<16x32xf32>
    %58 = tpu.matmul %56, %57, %cst_24 {dimension_numbers = #tpu.dot_dimension_numbers<[1], [0], [0], [1], [0, 0, 1, 1], [], []>} : vector<16x16xbf16>, vector<16x32xbf16>, vector<16x32xf32> -> vector<16x32xf32>
    %59 = arith.addf %38, %58 : vector<16x32xf32>
    %60 = vector.extract_strided_slice %31 {offsets = [0, 16], sizes = [16, 16], strides = [1, 1]} : vector<16x32xbf16> to vector<16x16xbf16>
    %61 = vector.extract_strided_slice %33 {offsets = [0, 16], sizes = [16, 16], strides = [1, 1]} : vector<16x32xbf16> to vector<16x16xbf16>
    %62 = vector.extract_strided_slice %35 {offsets = [0, 16], sizes = [16, 16], strides = [1, 1]} : vector<16x32xbf16> to vector<16x16xbf16>
    %cst_25 = arith.constant dense<0.000000e+00> : vector<16x16xf32>
    %63 = tpu.matmul %60, %61, %cst_25 {dimension_numbers = #tpu.dot_dimension_numbers<[1], [1], [0], [0], [0, 0, 1, 0], [], []>} : vector<16x16xbf16>, vector<16x16xbf16>, vector<16x16xf32> -> vector<16x16xf32>
    %64 = arith.addf %63, %37 : vector<16x16xf32>
    %cst_26 = arith.constant dense<0xFF800000> : vector<16xf32>
    %65 = vector.multi_reduction <maximumf>, %64, %cst_26 [1] : vector<16x16xf32> to vector<16xf32>
    %66 = vector.shape_cast %65 : vector<16xf32> to vector<16x1xf32>
    %67 = vector.broadcast %66 : vector<16x1xf32> to vector<16x16xf32>
    %68 = arith.subf %64, %67 : vector<16x16xf32>
    %69 = math.exp %68 : vector<16x16xf32>
    %cst_27 = arith.constant dense<0.000000e+00> : vector<16xf32>
    %70 = vector.multi_reduction <add>, %69, %cst_27 [1] : vector<16x16xf32> to vector<16xf32>
    %71 = vector.shape_cast %70 : vector<16xf32> to vector<16x1xf32>
    %72 = tpu.reciprocal %71 {approx = true} : vector<16x1xf32> -> vector<16x1xf32>
    %73 = vector.broadcast %72 : vector<16x1xf32> to vector<16x16xf32>
    %74 = arith.mulf %69, %73 : vector<16x16xf32>
    %75 = arith.truncf %74 : vector<16x16xf32> to vector<16x16xbf16>
    %cst_28 = arith.constant dense<0.000000e+00> : vector<16x16xf32>
    %76 = tpu.matmul %75, %62, %cst_28 {dimension_numbers = #tpu.dot_dimension_numbers<[1], [0], [0], [1], [0, 0, 1, 1], [], []>} : vector<16x16xbf16>, vector<16x16xbf16>, vector<16x16xf32> -> vector<16x16xf32>
    %77 = arith.truncf %76 : vector<16x16xf32> to vector<16x16xbf16>
    %78 = vector.extract_strided_slice %36 {offsets = [16, 0], sizes = [16, 32], strides = [1, 1]} : vector<32x32xbf16> to vector<16x32xbf16>
    %cst_29 = arith.constant dense<0.000000e+00> : vector<16x32xf32>
    %79 = tpu.matmul %77, %78, %cst_29 {dimension_numbers = #tpu.dot_dimension_numbers<[1], [0], [0], [1], [0, 0, 1, 1], [], []>} : vector<16x16xbf16>, vector<16x32xbf16>, vector<16x32xf32> -> vector<16x32xf32>
    %80 = arith.addf %59, %79 : vector<16x32xf32>
    %81 = arith.addf %26, %80 : vector<16x32xf32>
    %c0_30 = arith.constant 0 : index
    %c0_31 = arith.constant 0 : index
    %82 = vector.load %arg3[%c0_30, %c0_31] : memref<16x1xf32, #tpu.memory_space<vmem>>, vector<16x1xf32>
    %c0_32 = arith.constant 0 : index
    %c0_33 = arith.constant 0 : index
    %83 = vector.load %arg4[%c0_32, %c0_33] : memref<16x1xf32, #tpu.memory_space<vmem>>, vector<16x1xf32>
    %c0_34 = arith.constant 0 : index
    %c0_35 = arith.constant 0 : index
    %84 = vector.load %arg10[%c0_34, %c0_35] : memref<1x32xf32, #tpu.memory_space<vmem>>, vector<1x32xf32>
    %c0_36 = arith.constant 0 : index
    %c0_37 = arith.constant 0 : index
    %85 = vector.load %arg11[%c0_36, %c0_37] : memref<1x32xf32, #tpu.memory_space<vmem>>, vector<1x32xf32>
    %cst_38 = arith.constant dense<0.000000e+00> : vector<16xf32>
    %86 = vector.multi_reduction <add>, %81, %cst_38 [1] : vector<16x32xf32> to vector<16xf32>
    %87 = vector.shape_cast %86 : vector<16xf32> to vector<16x1xf32>
    %cst_39 = arith.constant 3.200000e+01 : f32
    %88 = vector.broadcast %cst_39 : f32 to vector<16x1xf32>
    %89 = arith.divf %87, %88 : vector<16x1xf32>
    %90 = vector.broadcast %89 : vector<16x1xf32> to vector<16x32xf32>
    %91 = arith.subf %81, %90 : vector<16x32xf32>
    %92 = arith.mulf %91, %91 : vector<16x32xf32>
    %cst_40 = arith.constant dense<0.000000e+00> : vector<16xf32>
    %93 = vector.multi_reduction <add>, %92, %cst_40 [1] : vector<16x32xf32> to vector<16xf32>
    %94 = vector.shape_cast %93 : vector<16xf32> to vector<16x1xf32>
    %cst_41 = arith.constant 0.0322580636 : f32
    %95 = vector.broadcast %cst_41 : f32 to vector<16x1xf32>
    %96 = arith.mulf %94, %95 : vector<16x1xf32>
    %97 = math.sqrt %96 : vector<16x1xf32>
    %cst_42 = arith.constant 9.99999997E-7 : f32
    %98 = vector.broadcast %cst_42 : f32 to vector<16x1xf32>
    %99 = arith.addf %97, %98 : vector<16x1xf32>
    %100 = tpu.reciprocal %99 {approx = true} : vector<16x1xf32> -> vector<16x1xf32>
    %101 = vector.broadcast %100 : vector<16x1xf32> to vector<16x32xf32>
    %102 = arith.mulf %91, %101 : vector<16x32xf32>
    %103 = vector.broadcast %84 : vector<1x32xf32> to vector<16x32xf32>
    %104 = arith.mulf %103, %102 : vector<16x32xf32>
    %105 = vector.broadcast %85 : vector<1x32xf32> to vector<16x32xf32>
    %106 = arith.addf %104, %105 : vector<16x32xf32>
    %c0_43 = arith.constant 0 : index
    %c0_44 = arith.constant 0 : index
    %107 = vector.load %arg13[%c0_43, %c0_44] : memref<1x64xf32, #tpu.memory_space<vmem>>, vector<1x64xf32>
    %cst_45 = arith.constant 0.000000e+00 : f32
    %108 = vector.broadcast %cst_45 : f32 to vector<1x32xf32>
    %109 = vector.extract_strided_slice %106 {offsets = [0, 0], sizes = [15, 32], strides = [1, 1]} : vector<16x32xf32> to vector<15x32xf32>
    %110 = tpu.concatenate %108, %109 in 0 : vector<1x32xf32>, vector<15x32xf32> -> vector<16x32xf32>
    %111 = vector.broadcast %82 : vector<16x1xf32> to vector<16x32xf32>
    %112 = arith.mulf %110, %111 : vector<16x32xf32>
    %113 = vector.extract_strided_slice %106 {offsets = [1, 0], sizes = [15, 32], strides = [1, 1]} : vector<16x32xf32> to vector<15x32xf32>
    %114 = tpu.concatenate %113, %108 in 0 : vector<15x32xf32>, vector<1x32xf32> -> vector<16x32xf32>
    %115 = vector.broadcast %83 : vector<16x1xf32> to vector<16x32xf32>
    %116 = arith.mulf %114, %115 : vector<16x32xf32>
    %117 = tpu.concatenate %112, %106, %116 in 1 : vector<16x32xf32>, vector<16x32xf32>, vector<16x32xf32> -> vector<16x96xf32>
    %118 = arith.truncf %117 : vector<16x96xf32> to vector<16x96xbf16>
    %c0_46 = arith.constant 0 : index
    %c0_47 = arith.constant 0 : index
    %119 = vector.load %arg12[%c0_46, %c0_47] : memref<96x64xbf16, #tpu.memory_space<vmem>>, vector<96x64xbf16>
    %cst_48 = arith.constant dense<0.000000e+00> : vector<16x64xf32>
    %120 = tpu.matmul %118, %119, %cst_48 {dimension_numbers = #tpu.dot_dimension_numbers<[1], [0], [0], [1], [0, 0, 1, 1], [], []>} : vector<16x96xbf16>, vector<96x64xbf16>, vector<16x64xf32> -> vector<16x64xf32>
    %121 = vector.broadcast %107 : vector<1x64xf32> to vector<16x64xf32>
    %122 = arith.addf %121, %120 : vector<16x64xf32>
    %cst_49 = arith.constant 0.000000e+00 : f32
    %123 = vector.broadcast %cst_49 : f32 to vector<16x64xf32>
    %124 = arith.maximumf %122, %123 : vector<16x64xf32>
    %c0_50 = arith.constant 0 : index
    %c0_51 = arith.constant 0 : index
    %125 = vector.load %arg15[%c0_50, %c0_51] : memref<1x32xf32, #tpu.memory_space<vmem>>, vector<1x32xf32>
    %cst_52 = arith.constant 0.000000e+00 : f32
    %126 = vector.broadcast %cst_52 : f32 to vector<1x64xf32>
    %127 = vector.extract_strided_slice %124 {offsets = [0, 0], sizes = [15, 64], strides = [1, 1]} : vector<16x64xf32> to vector<15x64xf32>
    %128 = tpu.concatenate %126, %127 in 0 : vector<1x64xf32>, vector<15x64xf32> -> vector<16x64xf32>
    %129 = vector.broadcast %82 : vector<16x1xf32> to vector<16x64xf32>
    %130 = arith.mulf %128, %129 : vector<16x64xf32>
    %131 = vector.extract_strided_slice %124 {offsets = [1, 0], sizes = [15, 64], strides = [1, 1]} : vector<16x64xf32> to vector<15x64xf32>
    %132 = tpu.concatenate %131, %126 in 0 : vector<15x64xf32>, vector<1x64xf32> -> vector<16x64xf32>
    %133 = vector.broadcast %83 : vector<16x1xf32> to vector<16x64xf32>
    %134 = arith.mulf %132, %133 : vector<16x64xf32>
    %135 = tpu.concatenate %130, %124, %134 in 1 : vector<16x64xf32>, vector<16x64xf32>, vector<16x64xf32> -> vector<16x192xf32>
    %136 = arith.truncf %135 : vector<16x192xf32> to vector<16x192xbf16>
    %c0_53 = arith.constant 0 : index
    %c0_54 = arith.constant 0 : index
    %137 = vector.load %arg14[%c0_53, %c0_54] : memref<192x32xbf16, #tpu.memory_space<vmem>>, vector<192x32xbf16>
    %cst_55 = arith.constant dense<0.000000e+00> : vector<16x32xf32>
    %138 = tpu.matmul %136, %137, %cst_55 {dimension_numbers = #tpu.dot_dimension_numbers<[1], [0], [0], [1], [0, 0, 1, 1], [], []>} : vector<16x192xbf16>, vector<192x32xbf16>, vector<16x32xf32> -> vector<16x32xf32>
    %139 = vector.broadcast %125 : vector<1x32xf32> to vector<16x32xf32>
    %140 = arith.addf %139, %138 : vector<16x32xf32>
    %141 = arith.addf %81, %140 : vector<16x32xf32>
    %c0_56 = arith.constant 0 : index
    %c0_57 = arith.constant 0 : index
    %142 = vector.load %arg16[%c0_56, %c0_57] : memref<1x32xf32, #tpu.memory_space<vmem>>, vector<1x32xf32>
    %c0_58 = arith.constant 0 : index
    %c0_59 = arith.constant 0 : index
    %143 = vector.load %arg17[%c0_58, %c0_59] : memref<1x32xf32, #tpu.memory_space<vmem>>, vector<1x32xf32>
    %cst_60 = arith.constant dense<0.000000e+00> : vector<16xf32>
    %144 = vector.multi_reduction <add>, %141, %cst_60 [1] : vector<16x32xf32> to vector<16xf32>
    %145 = vector.shape_cast %144 : vector<16xf32> to vector<16x1xf32>
    %cst_61 = arith.constant 3.200000e+01 : f32
    %146 = vector.broadcast %cst_61 : f32 to vector<16x1xf32>
    %147 = arith.divf %145, %146 : vector<16x1xf32>
    %148 = vector.broadcast %147 : vector<16x1xf32> to vector<16x32xf32>
    %149 = arith.subf %141, %148 : vector<16x32xf32>
    %150 = arith.mulf %149, %149 : vector<16x32xf32>
    %cst_62 = arith.constant dense<0.000000e+00> : vector<16xf32>
    %151 = vector.multi_reduction <add>, %150, %cst_62 [1] : vector<16x32xf32> to vector<16xf32>
    %152 = vector.shape_cast %151 : vector<16xf32> to vector<16x1xf32>
    %cst_63 = arith.constant 0.0322580636 : f32
    %153 = vector.broadcast %cst_63 : f32 to vector<16x1xf32>
    %154 = arith.mulf %152, %153 : vector<16x1xf32>
    %155 = math.sqrt %154 : vector<16x1xf32>
    %cst_64 = arith.constant 9.99999997E-7 : f32
    %156 = vector.broadcast %cst_64 : f32 to vector<16x1xf32>
    %157 = arith.addf %155, %156 : vector<16x1xf32>
    %158 = tpu.reciprocal %157 {approx = true} : vector<16x1xf32> -> vector<16x1xf32>
    %159 = vector.broadcast %158 : vector<16x1xf32> to vector<16x32xf32>
    %160 = arith.mulf %149, %159 : vector<16x32xf32>
    %161 = vector.broadcast %142 : vector<1x32xf32> to vector<16x32xf32>
    %162 = arith.mulf %161, %160 : vector<16x32xf32>
    %163 = vector.broadcast %143 : vector<1x32xf32> to vector<16x32xf32>
    %164 = arith.addf %162, %163 : vector<16x32xf32>
    %cst_65 = arith.constant 0.000000e+00 : f32
    %165 = vector.broadcast %cst_65 : f32 to vector<16x96xf32>
    %166 = tpu.concatenate %164, %165 in 1 : vector<16x32xf32>, vector<16x96xf32> -> vector<16x128xf32>
    %c0_66 = arith.constant 0 : index
    %c0_67 = arith.constant 0 : index
    %167 = vector.load %arg18[%c0_66, %c0_67] : memref<16x128xf32, #tpu.memory_space<vmem>>, vector<16x128xf32>
    tpu.vector_store %arg18[%c0_66, %c0_67], %166 {strides = array<i32>} : memref<16x128xf32, #tpu.memory_space<vmem>>, vector<16x128xf32>,
    return
  }
  func.func @transform_0(%arg0: i32) -> (i32, i32) {
    %c0_i32 = arith.constant 0 : i32
    %c0_i32_0 = arith.constant 0 : i32
    %c0_i32_1 = arith.constant 0 : i32
    return %c0_i32, %c0_i32_0 : i32, i32
  }
  func.func @transform_1(%arg0: i32) -> (i32, i32) {
    %c0_i32 = arith.constant 0 : i32
    %c0_i32_0 = arith.constant 0 : i32
    %c0_i32_1 = arith.constant 0 : i32
    return %c0_i32, %c0_i32_0 : i32, i32
  }
  func.func @transform_2(%arg0: i32) -> (i32, i32) {
    %c0_i32 = arith.constant 0 : i32
    %c0_i32_0 = arith.constant 0 : i32
    %c0_i32_1 = arith.constant 0 : i32
    return %c0_i32, %c0_i32_0 : i32, i32
  }
  func.func @transform_3(%arg0: i32) -> (i32, i32) {
    %c0_i32 = arith.constant 0 : i32
    %c0_i32_0 = arith.constant 0 : i32
    %c0_i32_1 = arith.constant 0 : i32
    return %c0_i32, %c0_i32_0 : i32, i32
  }
  func.func @transform_4(%arg0: i32) -> (i32, i32) {
    %c0_i32 = arith.constant 0 : i32
    %c0_i32_0 = arith.constant 0 : i32
    %c0_i32_1 = arith.constant 0 : i32
    return %c0_i32, %c0_i32_0 : i32, i32
  }
  func.func @transform_5(%arg0: i32) -> (i32, i32) {
    %c0_i32 = arith.constant 0 : i32
    %c0_i32_0 = arith.constant 0 : i32
    %c0_i32_1 = arith.constant 0 : i32
    return %c0_i32, %c0_i32_0 : i32, i32
  }
  func.func @transform_6(%arg0: i32) -> (i32, i32) {
    %c0_i32 = arith.constant 0 : i32
    %c0_i32_0 = arith.constant 0 : i32
    %c0_i32_1 = arith.constant 0 : i32
    return %c0_i32, %c0_i32_0 : i32, i32
  }
  func.func @transform_7(%arg0: i32) -> (i32, i32) {
    %c0_i32 = arith.constant 0 : i32
    %c0_i32_0 = arith.constant 0 : i32
    %c0_i32_1 = arith.constant 0 : i32
    return %c0_i32, %c0_i32_0 : i32, i32
  }
  func.func @transform_8(%arg0: i32) -> (i32, i32) {
    %c0_i32 = arith.constant 0 : i32
    %c0_i32_0 = arith.constant 0 : i32
    %c0_i32_1 = arith.constant 0 : i32
    return %c0_i32, %c0_i32_0 : i32, i32
  }
  func.func @transform_9(%arg0: i32) -> (i32, i32) {
    %c0_i32 = arith.constant 0 : i32
    %c0_i32_0 = arith.constant 0 : i32
    %c0_i32_1 = arith.constant 0 : i32
    return %c0_i32, %c0_i32_0 : i32, i32
  }
  func.func @transform_10(%arg0: i32) -> (i32, i32) {
    %c0_i32 = arith.constant 0 : i32
    %c0_i32_0 = arith.constant 0 : i32
    %c0_i32_1 = arith.constant 0 : i32
    return %c0_i32, %c0_i32_0 : i32, i32
  }
  func.func @transform_11(%arg0: i32) -> (i32, i32) {
    %c0_i32 = arith.constant 0 : i32
    %c0_i32_0 = arith.constant 0 : i32
    %c0_i32_1 = arith.constant 0 : i32
    return %c0_i32, %c0_i32_0 : i32, i32
  }
  func.func @transform_12(%arg0: i32) -> (i32, i32) {
    %c0_i32 = arith.constant 0 : i32
    %c0_i32_0 = arith.constant 0 : i32
    %c0_i32_1 = arith.constant 0 : i32
    return %c0_i32, %c0_i32_0 : i32, i32
  }
  func.func @transform_13(%arg0: i32) -> (i32, i32) {
    %c0_i32 = arith.constant 0 : i32
    %c0_i32_0 = arith.constant 0 : i32
    %c0_i32_1 = arith.constant 0 : i32
    return %c0_i32, %c0_i32_0 : i32, i32
  }
  func.func @transform_14(%arg0: i32) -> (i32, i32) {
    %c0_i32 = arith.constant 0 : i32
    %c0_i32_0 = arith.constant 0 : i32
    %c0_i32_1 = arith.constant 0 : i32
    return %c0_i32, %c0_i32_0 : i32, i32
  }
  func.func @transform_15(%arg0: i32) -> (i32, i32) {
    %c0_i32 = arith.constant 0 : i32
    %c0_i32_0 = arith.constant 0 : i32
    %c0_i32_1 = arith.constant 0 : i32
    return %c0_i32, %c0_i32_0 : i32, i32
  }
  func.func @transform_16(%arg0: i32) -> (i32, i32) {
    %c0_i32 = arith.constant 0 : i32
    %c0_i32_0 = arith.constant 0 : i32
    %c0_i32_1 = arith.constant 0 : i32
    return %c0_i32, %c0_i32_0 : i32, i32
  }
  func.func @transform_17(%arg0: i32) -> (i32, i32) {
    %c0_i32 = arith.constant 0 : i32
    %c0_i32_0 = arith.constant 0 : i32
    %c0_i32_1 = arith.constant 0 : i32
    return %c0_i32, %c0_i32_0 : i32, i32
  }
}

</mosaic_0001>

<llo_original>
// kernel: tpu_custom_call.1
$region0: #{tpu_custom_call.1}
  #allocation0 [shape = 'u32[]', space=smem, size = 0x4, offset = 0x4, fixed_abs, tag = 'smem constant byte address 0x4 - core index']
  #allocation1 [shape = 'u32[144,128]{1,0:T(1,128)}', space=vmem, size = 0x12000, scoped, tag = 'internal scratch']
  %s0 = inlined_call_operand.vmem [shape: bf16[32,32], index: 0, kind: input, shape index: {}]
  %s1 = inlined_call_operand.vmem [shape: f32[16,16], index: 1, kind: input, shape index: {}]
  %s2 = inlined_call_operand.vmem [shape: f32[16,1], index: 2, kind: input, shape index: {}]
  %s3 = inlined_call_operand.vmem [shape: f32[16,1], index: 3, kind: input, shape index: {}]
  %s4 = inlined_call_operand.vmem [shape: bf16[32,32], index: 4, kind: input, shape index: {}]
  %s5 = inlined_call_operand.vmem [shape: f32[1,32], index: 5, kind: input, shape index: {}]
  %s6 = inlined_call_operand.vmem [shape: f32[1,32], index: 6, kind: input, shape index: {}]
  %s7 = inlined_call_operand.vmem [shape: bf16[32,96], index: 7, kind: input, shape index: {}]
  %s8 = inlined_call_operand.vmem [shape: bf16[32,32], index: 8, kind: input, shape index: {}]
  %s9 = inlined_call_operand.vmem [shape: f32[1,32], index: 9, kind: input, shape index: {}]
  %s10 = inlined_call_operand.vmem [shape: f32[1,32], index: 10, kind: input, shape index: {}]
  %s11 = inlined_call_operand.vmem [shape: bf16[96,64], index: 11, kind: input, shape index: {}]
  %s12 = inlined_call_operand.vmem [shape: f32[1,64], index: 12, kind: input, shape index: {}]
  %s13 = inlined_call_operand.vmem [shape: bf16[192,32], index: 13, kind: input, shape index: {}]
  %s14 = inlined_call_operand.vmem [shape: f32[1,32], index: 14, kind: input, shape index: {}]
  %s15 = inlined_call_operand.vmem [shape: f32[1,32], index: 15, kind: input, shape index: {}]
  %s16 = inlined_call_operand.vmem [shape: f32[1,32], index: 16, kind: input, shape index: {}]
  %s17 = inlined_call_operand.hbm [shape: f32[16,128], index: 17, kind: output, shape index: {}]
  %s18 = sld [smem:[#allocation0]]
  $region78: #{tpu_custom_call.1} parent=0
    _
  %s20 = ssub.s32 1, %s18
  %s21 = scalar_select 0, %s20, %s18
  $region1: #{tpu_custom_call.1} parent=0
    #allocation2 [shape = 'u8[8192]{0}', space=vmem, size = 0x2000, scoped, tag = 'output window, operand 0, single buffered']
    #allocation3 [shape = 's32[1]{0}', space=sflag, size = 0x4, scoped, tag = 'scoped memory for tpu_custom_call.1']
    %22 = vsyncpa [#allocation3], 0
    // Predicated region
    $region2: #{tpu_custom_call.1} parent=1 // pred_check
      _
    $region3: #{tpu_custom_call.1} parent=1 // pred_check_branch
      %24 = sbr.rel (0) target = $region5
    $region4: #{tpu_custom_call.1} parent=1 // pred_region
      _
    $region5: #{tpu_custom_call.1} parent=1 // pred_fallthru
      _
    // Predicated region
    $region6: #{tpu_custom_call.1} parent=1 // pred_check
      _
    $region7: #{tpu_custom_call.1} parent=1 // pred_check_branch
      %26 = sbr.rel (0) target = $region9
    $region8: #{tpu_custom_call.1} parent=1 // pred_region
      _
    $region9: #{tpu_custom_call.1} parent=1 // pred_fallthru
      _
    // Predicated region
    $region10: #{tpu_custom_call.1} parent=1 // pred_check
      _
    $region11: #{tpu_custom_call.1} parent=1 // pred_check_branch
      %28 = sbr.rel (0) target = $region13
    $region12: #{tpu_custom_call.1} parent=1 // pred_region
      _
    $region13: #{tpu_custom_call.1} parent=1 // pred_fallthru
      _
    // Predicated region
    $region14: #{tpu_custom_call.1} parent=1 // pred_check
      _
    $region15: #{tpu_custom_call.1} parent=1 // pred_check_branch
      %30 = sbr.rel (0) target = $region17
    $region16: #{tpu_custom_call.1} parent=1 // pred_region
      _
    $region17: #{tpu_custom_call.1} parent=1 // pred_fallthru
      _
    // Predicated region
    $region18: #{tpu_custom_call.1} parent=1 // pred_check
      _
    $region19: #{tpu_custom_call.1} parent=1 // pred_check_branch
      %32 = sbr.rel (0) target = $region21
    $region20: #{tpu_custom_call.1} parent=1 // pred_region
      _
    $region21: #{tpu_custom_call.1} parent=1 // pred_fallthru
      _
    // Predicated region
    $region22: #{tpu_custom_call.1} parent=1 // pred_check
      _
    $region23: #{tpu_custom_call.1} parent=1 // pred_check_branch
      %34 = sbr.rel (0) target = $region25
    $region24: #{tpu_custom_call.1} parent=1 // pred_region
      _
    $region25: #{tpu_custom_call.1} parent=1 // pred_fallthru
      _
    // Predicated region
    $region26: #{tpu_custom_call.1} parent=1 // pred_check
      _
    $region27: #{tpu_custom_call.1} parent=1 // pred_check_branch
      %36 = sbr.rel (0) target = $region29
    $region28: #{tpu_custom_call.1} parent=1 // pred_region
      _
    $region29: #{tpu_custom_call.1} parent=1 // pred_fallthru
      _
    // Predicated region
    $region30: #{tpu_custom_call.1} parent=1 // pred_check
      _
    $region31: #{tpu_custom_call.1} parent=1 // pred_check_branch
      %38 = sbr.rel (0) target = $region33
    $region32: #{tpu_custom_call.1} parent=1 // pred_region
      _
    $region33: #{tpu_custom_call.1} parent=1 // pred_fallthru
      _
    // Predicated region
    $region34: #{tpu_custom_call.1} parent=1 // pred_check
      _
    $region35: #{tpu_custom_call.1} parent=1 // pred_check_branch
      %40 = sbr.rel (0) target = $region37
    $region36: #{tpu_custom_call.1} parent=1 // pred_region
      _
    $region37: #{tpu_custom_call.1} parent=1 // pred_fallthru
      _
    // Predicated region
    $region38: #{tpu_custom_call.1} parent=1 // pred_check
      _
    $region39: #{tpu_custom_call.1} parent=1 // pred_check_branch
      %42 = sbr.rel (0) target = $region41
    $region40: #{tpu_custom_call.1} parent=1 // pred_region
      _
    $region41: #{tpu_custom_call.1} parent=1 // pred_fallthru
      _
    // Predicated region
    $region42: #{tpu_custom_call.1} parent=1 // pred_check
      _
    $region43: #{tpu_custom_call.1} parent=1 // pred_check_branch
      %44 = sbr.rel (0) target = $region45
    $region44: #{tpu_custom_call.1} parent=1 // pred_region
      _
    $region45: #{tpu_custom_call.1} parent=1 // pred_fallthru
      _
    // Predicated region
    $region46: #{tpu_custom_call.1} parent=1 // pred_check
      _
    $region47: #{tpu_custom_call.1} parent=1 // pred_check_branch
      %46 = sbr.rel (0) target = $region49
    $region48: #{tpu_custom_call.1} parent=1 // pred_region
      _
    $region49: #{tpu_custom_call.1} parent=1 // pred_fallthru
      _
    // Predicated region
    $region50: #{tpu_custom_call.1} parent=1 // pred_check
      _
    $region51: #{tpu_custom_call.1} parent=1 // pred_check_branch
      %48 = sbr.rel (0) target = $region53
    $region52: #{tpu_custom_call.1} parent=1 // pred_region
      _
    $region53: #{tpu_custom_call.1} parent=1 // pred_fallthru
      _
    // Predicated region
    $region54: #{tpu_custom_call.1} parent=1 // pred_check
      _
    $region55: #{tpu_custom_call.1} parent=1 // pred_check_branch
      %50 = sbr.rel (0) target = $region57
    $region56: #{tpu_custom_call.1} parent=1 // pred_region
      _
    $region57: #{tpu_custom_call.1} parent=1 // pred_fallthru
      _
    // Predicated region
    $region58: #{tpu_custom_call.1} parent=1 // pred_check
      _
    $region59: #{tpu_custom_call.1} parent=1 // pred_check_branch
      %52 = sbr.rel (0) target = $region61
    $region60: #{tpu_custom_call.1} parent=1 // pred_region
      _
    $region61: #{tpu_custom_call.1} parent=1 // pred_fallthru
      _
    // Predicated region
    $region62: #{tpu_custom_call.1} parent=1 // pred_check
      _
    $region63: #{tpu_custom_call.1} parent=1 // pred_check_branch
      %54 = sbr.rel (0) target = $region65
    $region64: #{tpu_custom_call.1} parent=1 // pred_region
      _
    $region65: #{tpu_custom_call.1} parent=1 // pred_fallthru
      _
    // Predicated region
    $region66: #{tpu_custom_call.1} parent=1 // pred_check
      _
    $region67: #{tpu_custom_call.1} parent=1 // pred_check_branch
      %56 = sbr.rel (0) target = $region69
    $region68: #{tpu_custom_call.1} parent=1 // pred_region
      _
    $region69: #{tpu_custom_call.1} parent=1 // pred_fallthru
      _
    %v58 = vld [vmem:[%s0] sm:$0xf]
    %v59 = vld [vmem:[%s0 + $0x4] sm:$0xf]
    %v60 = vld [vmem:[%s0 + $0x8] sm:$0xf]
    %v61 = vld [vmem:[%s0 + $0xc] sm:$0xf]
    %v62 = vld [vmem:[%s4] sm:$0xf]
    %v63 = vld [vmem:[%s4 + $0x4] sm:$0xf]
    %v64 = vld [vmem:[%s4 + $0x8] sm:$0xf]
    %v65 = vld [vmem:[%s4 + $0xc] sm:$0xf]
    %v70 = vunpack.c.l.b16 %v58
    %v71 = vunpack.c.l.b16 %v59
    %v72 = vunpack.c.l.b16 %v60
    %v73 = vunpack.c.l.b16 %v61
    %v74 = vpack.c.b16 %v71, %v70
    %v75 = vpack.c.b16 %v73, %v72
    %v80 = vunpack.c.l.b16 %v62
    %v81 = vunpack.c.l.b16 %v63
    %v82 = vunpack.c.l.b16 %v64
    %v83 = vunpack.c.l.b16 %v65
    %v84 = vpack.c.b16 %v81, %v80
    %v85 = vpack.c.b16 %v83, %v82
    %vm88 = vcmask 261120
    %v90 = vsel %vm88, %v74, 0
    %v93 = vsel %vm88, %v75, 0
    %95 = vmatprep.subr.bf16.mxu0 0
    %96 = vmatpush1.bf16.msra.mxu0 %v84
    %97 = vmatprep.subr.bf16.mxu0 0
    %98 = vmatpush1.bf16.msra.mxu0 %v85
    %99 = vmatprep.subr.bf16.mxu0 0
    %100 = vmatpush1.bf16.msra.mxu0 0
    %101 = vmatprep.subr.bf16.mxu0 0
    %102 = vmatpush1.bf16.msra.mxu0 0
    %103 = vmatprep.subr.bf16.mxu0 0
    %104 = vmatpush1.bf16.msra.mxu0 0
    %105 = vmatprep.subr.bf16.mxu0 0
    %106 = vmatpush1.bf16.msra.mxu0 0
    %107 = vmatprep.subr.bf16.mxu0 0
    %108 = vmatpush1.bf16.msra.mxu0 0
    %109 = vmatprep.subr.bf16.mxu0 0
    %110 = vmatpush1.bf16.msra.mxu0 0
    %111 = vmatprep.subr.bf16.mxu0 0
    %112 = vmatpush1.bf16.msra.mxu0 0
    %113 = vmatprep.subr.bf16.mxu0 0
    %114 = vmatpush1.bf16.msra.mxu0 0
    %115 = vmatprep.subr.bf16.mxu0 0
    %116 = vmatpush1.bf16.msra.mxu0 0
    %117 = vmatprep.subr.bf16.mxu0 0
    %118 = vmatpush1.bf16.msra.mxu0 0
    %119 = vmatprep.subr.bf16.mxu0 0
    %120 = vmatpush1.bf16.msra.mxu0 0
    %121 = vmatprep.subr.bf16.mxu0 0
    %122 = vmatpush1.bf16.msra.mxu0 0
    %123 = vmatprep.subr.bf16.mxu0 0
    %124 = vmatpush1.bf16.msra.mxu0 0
    %125 = vmatprep.subr.bf16.mxu0 0
    %126 = vmatpush1.bf16.msra.mxu0 0
    %127 = vmatprep.mubr.bf16.mxu0 0
    %128 = vmatmul.mubr.bf16.gmra.mrb[0].mxu0 %v90
    %v129 = vpop.f32.mrb[0].mxu0
    %v130 = vadd.f32 0.0, %v129
    %v131 = vpop.f32.mrb[0].mxu0
    %v132 = vpop.f32.mrb[0].mxu0
    %v133 = vadd.f32 0.0, %v132
    %v134 = vpop.f32.mrb[0].mxu0
    %135 = vmatprep.mubr.bf16.mxu0 0
    %136 = vmatmul.mubr.bf16.gmra.mrb[0].mxu0 %v93
    %v137 = vpop.f32.mrb[0].mxu0
    %v138 = vadd.f32 0.0, %v137
    %v139 = vpop.f32.mrb[0].mxu0
    %v140 = vpop.f32.mrb[0].mxu0
    %v141 = vadd.f32 0.0, %v140
    %v142 = vpop.f32.mrb[0].mxu0
    %143 = vdwg.mxu0
    %v144 = vld [vmem:[%s5] sm:$0x1]
    %v145 = vld [vmem:[%s6] sm:$0x1]
    %v146 = vsel %vm88, %v130, 0.0
    %147 = vadd.xlane.f32.xlu0 %v146
    %v148 = vpop.xlane.xlu0 %147
    %v149 = vsel %vm88, %v133, 0.0
    %150 = vadd.xlane.f32.xlu0 %v149
    %v151 = vpop.xlane.xlu0 %150
    %v152 = vsel %vm88, %v138, 0.0
    %153 = vadd.xlane.f32.xlu0 %v152
    %v154 = vpop.xlane.xlu0 %153
    %v155 = vsel %vm88, %v141, 0.0
    %156 = vadd.xlane.f32.xlu0 %v155
    %v157 = vpop.xlane.xlu0 %156
    %v158 = vrcp.pop 32.0
    %v159 = vmul.f32 %v148, %v158
    %v160 = vmul.f32 %v151, %v158
    %v161 = vmul.f32 %v154, %v158
    %v162 = vmul.f32 %v157, %v158
    %v163 = vsub.f32 %v130, %v159
    %v164 = vsub.f32 %v133, %v160
    %v165 = vsub.f32 %v138, %v161
    %v166 = vsub.f32 %v141, %v162
    %v167 = vmul.f32 %v163, %v163
    %v168 = vmul.f32 %v164, %v164
    %v169 = vmul.f32 %v165, %v165
    %v170 = vmul.f32 %v166, %v166
    %v171 = vsel %vm88, %v167, 0.0
    %172 = vadd.xlane.f32.xlu0 %v171
    %v173 = vpop.xlane.xlu0 %172
    %v174 = vsel %vm88, %v168, 0.0
    %175 = vadd.xlane.f32.xlu0 %v174
    %v176 = vpop.xlane.xlu0 %175
    %v177 = vsel %vm88, %v169, 0.0
    %178 = vadd.xlane.f32.xlu0 %v177
    %v179 = vpop.xlane.xlu0 %178
    %v180 = vsel %vm88, %v170, 0.0
    %181 = vadd.xlane.f32.xlu0 %v180
    %v182 = vpop.xlane.xlu0 %181
    %v183 = vmul.f32 %v173, 0.032258064
    %v184 = vmul.f32 %v176, 0.032258064
    %v185 = vmul.f32 %v179, 0.032258064
    %v186 = vmul.f32 %v182, 0.032258064
    %v187 = vrsqrt.pop %v183
    %v188 = vmul.f32 %v183, %v187
    %vm189 = vcmp.eq.f32.partialorder %v183, inf
    %v190 = vsel %vm189, %v183, %v188
    %vm191 = vcmp.eq.f32.partialorder %v183, 0.0
    %v192 = vand.u32 %v183, 2147483648
    %v193 = vsel %vm191, %v192, %v190
    %v194 = vrsqrt.pop %v184
    %v195 = vmul.f32 %v184, %v194
    %vm196 = vcmp.eq.f32.partialorder %v184, inf
    %v197 = vsel %vm196, %v184, %v195
    %vm198 = vcmp.eq.f32.partialorder %v184, 0.0
    %v199 = vand.u32 %v184, 2147483648
    %v200 = vsel %vm198, %v199, %v197
    %v201 = vrsqrt.pop %v185
    %v202 = vmul.f32 %v185, %v201
    %vm203 = vcmp.eq.f32.partialorder %v185, inf
    %v204 = vsel %vm203, %v185, %v202
    %vm205 = vcmp.eq.f32.partialorder %v185, 0.0
    %v206 = vand.u32 %v185, 2147483648
    %v207 = vsel %vm205, %v206, %v204
    %v208 = vrsqrt.pop %v186
    %v209 = vmul.f32 %v186, %v208
    %vm210 = vcmp.eq.f32.partialorder %v186, inf
    %v211 = vsel %vm210, %v186, %v209
    %vm212 = vcmp.eq.f32.partialorder %v186, 0.0
    %v213 = vand.u32 %v186, 2147483648
    %v214 = vsel %vm212, %v213, %v211
    %v215 = vadd.f32 %v193, 1e-06
    %v216 = vadd.f32 %v200, 1e-06
    %v217 = vadd.f32 %v207, 1e-06
    %v218 = vadd.f32 %v214, 1e-06
    %v219 = vrcp.pop %v215
    %v220 = vrcp.pop %v216
    %v221 = vrcp.pop %v217
    %v222 = vrcp.pop %v218
    %v223 = vmul.f32 %v163, %v219
    %v224 = vmul.f32 %v164, %v220
    %v225 = vmul.f32 %v165, %v221
    %v226 = vmul.f32 %v166, %v222
    %v228 = vlaneseq
    %v229 = vshrl.u32 %v228, 7
    %v230 = vsub.s32 0, %v229
    %v231 = vrot.slane %v144, %v230
    %v233 = vmul.f32 %v231, %v223
    %v234 = vmul.f32 %v231, %v224
    %v235 = vmul.f32 %v231, %v225
    %v236 = vmul.f32 %v231, %v226
    %v238 = vlaneseq
    %v239 = vshrl.u32 %v238, 7
    %v240 = vsub.s32 0, %v239
    %v241 = vrot.slane %v145, %v240
    %v243 = vadd.f32 %v233, %v241
    %v244 = vadd.f32 %v234, %v241
    %v245 = vadd.f32 %v235, %v241
    %v246 = vadd.f32 %v236, %v241
    %v247 = vpack.c.bf16 %v244, %v243
    %v248 = vpack.c.bf16 %v246, %v245
    %v249 = vld [vmem:[%s7] sm:$0xf]
    %v250 = vld [vmem:[%s7 + $0x4] sm:$0xf]
    %v251 = vld [vmem:[%s7 + $0x8] sm:$0xf]
    %v252 = vld [vmem:[%s7 + $0xc] sm:$0xf]
    %v257 = vunpack.c.l.b16 %v249
    %v258 = vunpack.c.l.b16 %v250
    %v259 = vunpack.c.l.b16 %v251
    %v260 = vunpack.c.l.b16 %v252
    %v261 = vpack.c.b16 %v258, %v257
    %v262 = vpack.c.b16 %v260, %v259
    %v266 = vsel %vm88, %v247, 0
    %v269 = vsel %vm88, %v248, 0
    %271 = vmatprep.subr.bf16.mxu0 0
    %272 = vmatpush1.bf16.msra.mxu0 %v261
    %273 = vmatprep.subr.bf16.mxu0 0
    %274 = vmatpush1.bf16.msra.mxu0 %v262
    %275 = vmatprep.subr.bf16.mxu0 0
    %276 = vmatpush1.bf16.msra.mxu0 0
    %277 = vmatprep.subr.bf16.mxu0 0
    %278 = vmatpush1.bf16.msra.mxu0 0
    %279 = vmatprep.subr.bf16.mxu0 0
    %280 = vmatpush1.bf16.msra.mxu0 0
    %281 = vmatprep.subr.bf16.mxu0 0
    %282 = vmatpush1.bf16.msra.mxu0 0
    %283 = vmatprep.subr.bf16.mxu0 0
    %284 = vmatpush1.bf16.msra.mxu0 0
    %285 = vmatprep.subr.bf16.mxu0 0
    %286 = vmatpush1.bf16.msra.mxu0 0
    %287 = vmatprep.subr.bf16.mxu0 0
    %288 = vmatpush1.bf16.msra.mxu0 0
    %289 = vmatprep.subr.bf16.mxu0 0
    %290 = vmatpush1.bf16.msra.mxu0 0
    %291 = vmatprep.subr.bf16.mxu0 0
    %292 = vmatpush1.bf16.msra.mxu0 0
    %293 = vmatprep.subr.bf16.mxu0 0
    %294 = vmatpush1.bf16.msra.mxu0 0
    %295 = vmatprep.subr.bf16.mxu0 0
    %296 = vmatpush1.bf16.msra.mxu0 0
    %297 = vmatprep.subr.bf16.mxu0 0
    %298 = vmatpush1.bf16.msra.mxu0 0
    %299 = vmatprep.subr.bf16.mxu0 0
    %300 = vmatpush1.bf16.msra.mxu0 0
    %301 = vmatprep.subr.bf16.mxu0 0
    %302 = vmatpush1.bf16.msra.mxu0 0
    %303 = vmatprep.mubr.bf16.mxu0 0
    %304 = vmatmul.mubr.bf16.gmra.mrb[0].mxu0 %v266
    %v305 = vpop.f32.mrb[0].mxu0
    %v306 = vadd.f32 0.0, %v305
    %v307 = vpop.f32.mrb[0].mxu0
    %v308 = vpop.f32.mrb[0].mxu0
    %v309 = vadd.f32 0.0, %v308
    %v310 = vpop.f32.mrb[0].mxu0
    %311 = vmatprep.mubr.bf16.mxu0 0
    %312 = vmatmul.mubr.bf16.gmra.mrb[0].mxu0 %v269
    %v313 = vpop.f32.mrb[0].mxu0
    %v314 = vadd.f32 0.0, %v313
    %v315 = vpop.f32.mrb[0].mxu0
    %v316 = vpop.f32.mrb[0].mxu0
    %v317 = vadd.f32 0.0, %v316
    %v318 = vpop.f32.mrb[0].mxu0
    %319 = vdwg.mxu0
    %v320 = vpack.c.bf16 %v309, %v306
    %v321 = vpack.c.bf16 %v317, %v314
    %v322 = vld [vmem:[%s8] sm:$0xf]
    %v323 = vld [vmem:[%s8 + $0x4] sm:$0xf]
    %v324 = vld [vmem:[%s8 + $0x8] sm:$0xf]
    %v325 = vld [vmem:[%s8 + $0xc] sm:$0xf]
    %v326 = vld [vmem:[%s1] sm:$0xff]
    %v327 = vld [vmem:[%s1 + $0x8] sm:$0xff]
    %329 = vrot.lane.b32.xlu0 %v321, 96
    %v330 = vpop.permute.xlu0 %329
    %vm331 = vcmask 130048
    %v333 = vsel %vm331, %v320, 0
    %v336 = vsel %vm331, %v330, 0
    %338 = vmatprep.subr.bf16.mxu0 0
    %339 = vmatpush1.bf16.xpose.msra.mxu0 %v336
    %340 = vmatprep.subr.bf16.mxu0 0
    %341 = vmatpush1.bf16.xpose.msra.mxu0 0
    %342 = vmatprep.subr.bf16.mxu0 0
    %343 = vmatpush1.bf16.xpose.msra.mxu0 0
    %344 = vmatprep.subr.bf16.mxu0 0
    %345 = vmatpush1.bf16.xpose.msra.mxu0 0
    %346 = vmatprep.subr.bf16.mxu0 0
    %347 = vmatpush1.bf16.xpose.msra.mxu0 0
    %348 = vmatprep.subr.bf16.mxu0 0
    %349 = vmatpush1.bf16.xpose.msra.mxu0 0
    %350 = vmatprep.subr.bf16.mxu0 0
    %351 = vmatpush1.bf16.xpose.msra.mxu0 0
    %352 = vmatprep.subr.bf16.mxu0 0
    %353 = vmatpush1.bf16.xpose.msra.mxu0 0
    %354 = vmatprep.subr.bf16.mxu0 0
    %355 = vmatpush1.bf16.xpose.msra.mxu0 0
    %356 = vmatprep.subr.bf16.mxu0 0
    %357 = vmatpush1.bf16.xpose.msra.mxu0 0
    %358 = vmatprep.subr.bf16.mxu0 0
    %359 = vmatpush1.bf16.xpose.msra.mxu0 0
    %360 = vmatprep.subr.bf16.mxu0 0
    %361 = vmatpush1.bf16.xpose.msra.mxu0 0
    %362 = vmatprep.subr.bf16.mxu0 0
    %363 = vmatpush1.bf16.xpose.msra.mxu0 0
    %364 = vmatprep.subr.bf16.mxu0 0
    %365 = vmatpush1.bf16.xpose.msra.mxu0 0
    %366 = vmatprep.subr.bf16.mxu0 0
    %367 = vmatpush1.bf16.xpose.msra.mxu0 0
    %368 = vmatprep.subr.bf16.mxu0 0
    %369 = vmatpush1.bf16.xpose.msra.mxu0 0
    %370 = vmatprep.mubr.bf16.mxu0 0
    %371 = vmatmul.mubr.bf16.gmra.mrb[0].mxu0 %v333
    %v372 = vpop.f32.mrb[0].mxu0
    %v373 = vadd.f32 %v326, %v372
    %v374 = vpop.f32.mrb[0].mxu0
    %v375 = vpop.f32.mrb[0].mxu0
    %v376 = vadd.f32 %v327, %v375
    %v377 = vpop.f32.mrb[0].mxu0
    %378 = vdwg.mxu0
    %v379 = vsel %vm331, %v373, -inf
    %380 = vmax.xlane.f32.xlu0 %v379
    %v381 = vpop.xlane.xlu0 %380
    %v382 = vsel %vm331, %v376, -inf
    %383 = vmax.xlane.f32.xlu0 %v382
    %v384 = vpop.xlane.xlu0 %383
    %v385 = vsub.f32 %v373, %v381
    %v386 = vsub.f32 %v376, %v384
    %v387 = vmul.f32 %v385, 1.442695
    %v388 = vpow.pop %v387
    %v389 = vmul.f32 %v386, 1.442695
    %v390 = vpow.pop %v389
    %v391 = vsel %vm331, %v388, 0.0
    %392 = vadd.xlane.f32.xlu0 %v391
    %v393 = vpop.xlane.xlu0 %392
    %v394 = vsel %vm331, %v390, 0.0
    %395 = vadd.xlane.f32.xlu0 %v394
    %v396 = vpop.xlane.xlu0 %395
    %v397 = vrcp.pop %v393
    %v398 = vrcp.pop %v396
    %v399 = vmul.f32 %v388, %v397
    %v400 = vmul.f32 %v390, %v398
    %v401 = vpack.c.bf16 %v400, %v399
    %402 = vrot.lane.b32.xlu0 %v321, 64
    %v403 = vpop.permute.xlu0 %402
    %v406 = vsel %vm331, %v401, 0
    %408 = vmatprep.subr.bf16.mxu0 0
    %409 = vmatpush1.bf16.msra.mxu0 %v403
    %410 = vmatprep.subr.bf16.mxu0 0
    %411 = vmatpush1.bf16.msra.mxu0 0
    %412 = vmatprep.subr.bf16.mxu0 0
    %413 = vmatpush1.bf16.msra.mxu0 0
    %414 = vmatprep.subr.bf16.mxu0 0
    %415 = vmatpush1.bf16.msra.mxu0 0
    %416 = vmatprep.subr.bf16.mxu0 0
    %417 = vmatpush1.bf16.msra.mxu0 0
    %418 = vmatprep.subr.bf16.mxu0 0
    %419 = vmatpush1.bf16.msra.mxu0 0
    %420 = vmatprep.subr.bf16.mxu0 0
    %421 = vmatpush1.bf16.msra.mxu0 0
    %422 = vmatprep.subr.bf16.mxu0 0
    %423 = vmatpush1.bf16.msra.mxu0 0
    %424 = vmatprep.subr.bf16.mxu0 0
    %425 = vmatpush1.bf16.msra.mxu0 0
    %426 = vmatprep.subr.bf16.mxu0 0
    %427 = vmatpush1.bf16.msra.mxu0 0
    %428 = vmatprep.subr.bf16.mxu0 0
    %429 = vmatpush1.bf16.msra.mxu0 0
    %430 = vmatprep.subr.bf16.mxu0 0
    %431 = vmatpush1.bf16.msra.mxu0 0
    %432 = vmatprep.subr.bf16.mxu0 0
    %433 = vmatpush1.bf16.msra.mxu0 0
    %434 = vmatprep.subr.bf16.mxu0 0
    %435 = vmatpush1.bf16.msra.mxu0 0
    %436 = vmatprep.subr.bf16.mxu0 0
    %437 = vmatpush1.bf16.msra.mxu0 0
    %438 = vmatprep.subr.bf16.mxu0 0
    %439 = vmatpush1.bf16.msra.mxu0 0
    %440 = vmatprep.mubr.bf16.mxu0 0
    %441 = vmatmul.mubr.bf16.gmra.mrb[0].mxu0 %v406
    %v442 = vpop.f32.mrb[0].mxu0
    %v443 = vadd.f32 0.0, %v442
    %v444 = vpop.f32.mrb[0].mxu0
    %v445 = vpop.f32.mrb[0].mxu0
    %v446 = vadd.f32 0.0, %v445
    %v447 = vpop.f32.mrb[0].mxu0
    %448 = vdwg.mxu0
    %v449 = vpack.c.bf16 %v446, %v443
    %451 = vrot.lane.b32.xlu0 %v320, 112
    %v452 = vpop.permute.xlu0 %451
    %453 = vrot.lane.b32.xlu0 %v321, 80
    %v454 = vpop.permute.xlu0 %453
    %v456 = vsel %vm331, %v452, 0
    %v459 = vsel %vm331, %v454, 0
    %461 = vmatprep.subr.bf16.mxu0 0
    %462 = vmatpush1.bf16.xpose.msra.mxu0 %v459
    %463 = vmatprep.subr.bf16.mxu0 0
    %464 = vmatpush1.bf16.xpose.msra.mxu0 0
    %465 = vmatprep.subr.bf16.mxu0 0
    %466 = vmatpush1.bf16.xpose.msra.mxu0 0
    %467 = vmatprep.subr.bf16.mxu0 0
    %468 = vmatpush1.bf16.xpose.msra.mxu0 0
    %469 = vmatprep.subr.bf16.mxu0 0
    %470 = vmatpush1.bf16.xpose.msra.mxu0 0
    %471 = vmatprep.subr.bf16.mxu0 0
    %472 = vmatpush1.bf16.xpose.msra.mxu0 0
    %473 = vmatprep.subr.bf16.mxu0 0
    %474 = vmatpush1.bf16.xpose.msra.mxu0 0
    %475 = vmatprep.subr.bf16.mxu0 0
    %476 = vmatpush1.bf16.xpose.msra.mxu0 0
    %477 = vmatprep.subr.bf16.mxu0 0
    %478 = vmatpush1.bf16.xpose.msra.mxu0 0
    %479 = vmatprep.subr.bf16.mxu0 0
    %480 = vmatpush1.bf16.xpose.msra.mxu0 0
    %481 = vmatprep.subr.bf16.mxu0 0
    %482 = vmatpush1.bf16.xpose.msra.mxu0 0
    %483 = vmatprep.subr.bf16.mxu0 0
    %484 = vmatpush1.bf16.xpose.msra.mxu0 0
    %485 = vmatprep.subr.bf16.mxu0 0
    %486 = vmatpush1.bf16.xpose.msra.mxu0 0
    %487 = vmatprep.subr.bf16.mxu0 0
    %488 = vmatpush1.bf16.xpose.msra.mxu0 0
    %489 = vmatprep.subr.bf16.mxu0 0
    %490 = vmatpush1.bf16.xpose.msra.mxu0 0
    %491 = vmatprep.subr.bf16.mxu0 0
    %492 = vmatpush1.bf16.xpose.msra.mxu0 0
    %493 = vmatprep.mubr.bf16.mxu0 0
    %494 = vmatmul.mubr.bf16.gmra.mrb[0].mxu0 %v456
    %v495 = vpop.f32.mrb[0].mxu0
    %v496 = vadd.f32 %v326, %v495
    %v497 = vpop.f32.mrb[0].mxu0
    %v498 = vpop.f32.mrb[0].mxu0
    %v499 = vadd.f32 %v327, %v498
    %v500 = vpop.f32.mrb[0].mxu0
    %501 = vdwg.mxu0
    %v502 = vsel %vm331, %v496, -inf
    %503 = vmax.xlane.f32.xlu0 %v502
    %v504 = vpop.xlane.xlu0 %503
    %v505 = vsel %vm331, %v499, -inf
    %506 = vmax.xlane.f32.xlu0 %v505
    %v507 = vpop.xlane.xlu0 %506
    %v508 = vsub.f32 %v496, %v504
    %v509 = vsub.f32 %v499, %v507
    %v510 = vmul.f32 %v508, 1.442695
    %v511 = vpow.pop %v510
    %v512 = vmul.f32 %v509, 1.442695
    %v513 = vpow.pop %v512
    %v514 = vsel %vm331, %v511, 0.0
    %515 = vadd.xlane.f32.xlu0 %v514
    %v516 = vpop.xlane.xlu0 %515
    %v517 = vsel %vm331, %v513, 0.0
    %518 = vadd.xlane.f32.xlu0 %v517
    %v519 = vpop.xlane.xlu0 %518
    %v520 = vrcp.pop %v516
    %v521 = vrcp.pop %v519
    %v522 = vmul.f32 %v511, %v520
    %v523 = vmul.f32 %v513, %v521
    %v524 = vpack.c.bf16 %v523, %v522
    %525 = vrot.lane.b32.xlu0 %v321, 48
    %v526 = vpop.permute.xlu0 %525
    %v529 = vsel %vm331, %v524, 0
    %531 = vmatprep.subr.bf16.mxu0 0
    %532 = vmatpush1.bf16.msra.mxu0 %v526
    %533 = vmatprep.subr.bf16.mxu0 0
    %534 = vmatpush1.bf16.msra.mxu0 0
    %535 = vmatprep.subr.bf16.mxu0 0
    %536 = vmatpush1.bf16.msra.mxu0 0
    %537 = vmatprep.subr.bf16.mxu0 0
    %538 = vmatpush1.bf16.msra.mxu0 0
    %539 = vmatprep.subr.bf16.mxu0 0
    %540 = vmatpush1.bf16.msra.mxu0 0
    %541 = vmatprep.subr.bf16.mxu0 0
    %542 = vmatpush1.bf16.msra.mxu0 0
    %543 = vmatprep.subr.bf16.mxu0 0
    %544 = vmatpush1.bf16.msra.mxu0 0
    %545 = vmatprep.subr.bf16.mxu0 0
    %546 = vmatpush1.bf16.msra.mxu0 0
    %547 = vmatprep.subr.bf16.mxu0 0
    %548 = vmatpush1.bf16.msra.mxu0 0
    %549 = vmatprep.subr.bf16.mxu0 0
    %550 = vmatpush1.bf16.msra.mxu0 0
    %551 = vmatprep.subr.bf16.mxu0 0
    %552 = vmatpush1.bf16.msra.mxu0 0
    %553 = vmatprep.subr.bf16.mxu0 0
    %554 = vmatpush1.bf16.msra.mxu0 0
    %555 = vmatprep.subr.bf16.mxu0 0
    %556 = vmatpush1.bf16.msra.mxu0 0
    %557 = vmatprep.subr.bf16.mxu0 0
    %558 = vmatpush1.bf16.msra.mxu0 0
    %559 = vmatprep.subr.bf16.mxu0 0
    %560 = vmatpush1.bf16.msra.mxu0 0
    %561 = vmatprep.subr.bf16.mxu0 0
    %562 = vmatpush1.bf16.msra.mxu0 0
    %563 = vmatprep.mubr.bf16.mxu0 0
    %564 = vmatmul.mubr.bf16.gmra.mrb[0].mxu0 %v529
    %v565 = vpop.f32.mrb[0].mxu0
    %v566 = vadd.f32 0.0, %v565
    %v567 = vpop.f32.mrb[0].mxu0
    %v568 = vpop.f32.mrb[0].mxu0
    %v569 = vadd.f32 0.0, %v568
    %v570 = vpop.f32.mrb[0].mxu0
    %571 = vdwg.mxu0
    %v572 = vpack.c.bf16 %v569, %v566
    %v575 = vunpack.c.l.b16 %v324
    %v576 = vunpack.c.l.b16 %v325
    %v577 = vpack.c.b16 %v576, %v575
    %v580 = vsel %vm331, %v572, 0
    %582 = vmatprep.subr.bf16.mxu0 0
    %583 = vmatpush1.bf16.msra.mxu0 %v577
    %584 = vmatprep.subr.bf16.mxu0 0
    %585 = vmatpush1.bf16.msra.mxu0 0
    %586 = vmatprep.subr.bf16.mxu0 0
    %587 = vmatpush1.bf16.msra.mxu0 0
    %588 = vmatprep.subr.bf16.mxu0 0
    %589 = vmatpush1.bf16.msra.mxu0 0
    %590 = vmatprep.subr.bf16.mxu0 0
    %591 = vmatpush1.bf16.msra.mxu0 0
    %592 = vmatprep.subr.bf16.mxu0 0
    %593 = vmatpush1.bf16.msra.mxu0 0
    %594 = vmatprep.subr.bf16.mxu0 0
    %595 = vmatpush1.bf16.msra.mxu0 0
    %596 = vmatprep.subr.bf16.mxu0 0
    %597 = vmatpush1.bf16.msra.mxu0 0
    %598 = vmatprep.subr.bf16.mxu0 0
    %599 = vmatpush1.bf16.msra.mxu0 0
    %600 = vmatprep.subr.bf16.mxu0 0
    %601 = vmatpush1.bf16.msra.mxu0 0
    %602 = vmatprep.subr.bf16.mxu0 0
    %603 = vmatpush1.bf16.msra.mxu0 0
    %604 = vmatprep.subr.bf16.mxu0 0
    %605 = vmatpush1.bf16.msra.mxu0 0
    %606 = vmatprep.subr.bf16.mxu0 0
    %607 = vmatpush1.bf16.msra.mxu0 0
    %608 = vmatprep.subr.bf16.mxu0 0
    %609 = vmatpush1.bf16.msra.mxu0 0
    %610 = vmatprep.subr.bf16.mxu0 0
    %611 = vmatpush1.bf16.msra.mxu0 0
    %612 = vmatprep.subr.bf16.mxu0 0
    %613 = vmatpush1.bf16.msra.mxu0 0
    %614 = vmatprep.mubr.bf16.mxu0 0
    %615 = vmatmul.mubr.bf16.gmra.mrb[0].mxu0 %v580
    %v616 = vpop.f32.mrb[0].mxu0
    %v617 = vadd.f32 0.0, %v616
    %v618 = vpop.f32.mrb[0].mxu0
    %v619 = vpop.f32.mrb[0].mxu0
    %v620 = vadd.f32 0.0, %v619
    %v621 = vpop.f32.mrb[0].mxu0
    %622 = vdwg.mxu0
    %v625 = vunpack.c.l.b16 %v322
    %v626 = vunpack.c.l.b16 %v323
    %v627 = vpack.c.b16 %v626, %v625
    %v630 = vsel %vm331, %v449, 0
    %632 = vmatprep.subr.bf16.mxu0 0
    %633 = vmatpush1.bf16.msra.mxu0 %v627
    %634 = vmatprep.subr.bf16.mxu0 0
    %635 = vmatpush1.bf16.msra.mxu0 0
    %636 = vmatprep.subr.bf16.mxu0 0
    %637 = vmatpush1.bf16.msra.mxu0 0
    %638 = vmatprep.subr.bf16.mxu0 0
    %639 = vmatpush1.bf16.msra.mxu0 0
    %640 = vmatprep.subr.bf16.mxu0 0
    %641 = vmatpush1.bf16.msra.mxu0 0
    %642 = vmatprep.subr.bf16.mxu0 0
    %643 = vmatpush1.bf16.msra.mxu0 0
    %644 = vmatprep.subr.bf16.mxu0 0
    %645 = vmatpush1.bf16.msra.mxu0 0
    %646 = vmatprep.subr.bf16.mxu0 0
    %647 = vmatpush1.bf16.msra.mxu0 0
    %648 = vmatprep.subr.bf16.mxu0 0
    %649 = vmatpush1.bf16.msra.mxu0 0
    %650 = vmatprep.subr.bf16.mxu0 0
    %651 = vmatpush1.bf16.msra.mxu0 0
    %652 = vmatprep.subr.bf16.mxu0 0
    %653 = vmatpush1.bf16.msra.mxu0 0
    %654 = vmatprep.subr.bf16.mxu0 0
    %655 = vmatpush1.bf16.msra.mxu0 0
    %656 = vmatprep.subr.bf16.mxu0 0
    %657 = vmatpush1.bf16.msra.mxu0 0
    %658 = vmatprep.subr.bf16.mxu0 0
    %659 = vmatpush1.bf16.msra.mxu0 0
    %660 = vmatprep.subr.bf16.mxu0 0
    %661 = vmatpush1.bf16.msra.mxu0 0
    %662 = vmatprep.subr.bf16.mxu0 0
    %663 = vmatpush1.bf16.msra.mxu0 0
    %664 = vmatprep.mubr.bf16.mxu0 0
    %665 = vmatmul.mubr.bf16.gmra.mrb[0].mxu0 %v630
    %v666 = vpop.f32.mrb[0].mxu0
    %v667 = vadd.f32 %v617, %v666
    %v668 = vpop.f32.mrb[0].mxu0
    %v669 = vpop.f32.mrb[0].mxu0
    %v670 = vadd.f32 %v620, %v669
    %v671 = vpop.f32.mrb[0].mxu0
    %672 = vdwg.mxu0
    %v673 = vadd.f32 %v130, %v667
    %v674 = vadd.f32 %v133, %v670
    %v675 = vld [vmem:[%s2] sm:$0xff]
    %v676 = vld [vmem:[%s2 + $0x8] sm:$0xff]
    %v677 = vld [vmem:[%s3] sm:$0xff]
    %v678 = vld [vmem:[%s3 + $0x8] sm:$0xff]
    %v679 = vld [vmem:[%s9] sm:$0x1]
    %v680 = vld [vmem:[%s10] sm:$0x1]
    %v681 = vsel %vm88, %v673, 0.0
    %682 = vadd.xlane.f32.xlu0 %v681
    %v683 = vpop.xlane.xlu0 %682
    %v684 = vsel %vm88, %v674, 0.0
    %685 = vadd.xlane.f32.xlu0 %v684
    %v686 = vpop.xlane.xlu0 %685
    %v687 = vmul.f32 %v683, %v158
    %v688 = vmul.f32 %v686, %v158
    %v689 = vsub.f32 %v673, %v687
    %v690 = vsub.f32 %v674, %v688
    %v691 = vmul.f32 %v689, %v689
    %v692 = vmul.f32 %v690, %v690
    %v693 = vsel %vm88, %v691, 0.0
    %694 = vadd.xlane.f32.xlu0 %v693
    %v695 = vpop.xlane.xlu0 %694
    %v696 = vsel %vm88, %v692, 0.0
    %697 = vadd.xlane.f32.xlu0 %v696
    %v698 = vpop.xlane.xlu0 %697
    %v699 = vmul.f32 %v695, 0.032258064
    %v700 = vmul.f32 %v698, 0.032258064
    %v701 = vrsqrt.pop %v699
    %v702 = vmul.f32 %v699, %v701
    %vm703 = vcmp.eq.f32.partialorder %v699, inf
    %v704 = vsel %vm703, %v699, %v702
    %vm705 = vcmp.eq.f32.partialorder %v699, 0.0
    %v706 = vand.u32 %v699, 2147483648
    %v707 = vsel %vm705, %v706, %v704
    %v708 = vrsqrt.pop %v700
    %v709 = vmul.f32 %v700, %v708
    %vm710 = vcmp.eq.f32.partialorder %v700, inf
    %v711 = vsel %vm710, %v700, %v709
    %vm712 = vcmp.eq.f32.partialorder %v700, 0.0
    %v713 = vand.u32 %v700, 2147483648
    %v714 = vsel %vm712, %v713, %v711
    %v715 = vadd.f32 %v707, 1e-06
    %v716 = vadd.f32 %v714, 1e-06
    %v717 = vrcp.pop %v715
    %v718 = vrcp.pop %v716
    %v719 = vmul.f32 %v689, %v717
    %v720 = vmul.f32 %v690, %v718
    %v722 = vlaneseq
    %v723 = vshrl.u32 %v722, 7
    %v724 = vsub.s32 0, %v723
    %v725 = vrot.slane %v679, %v724
    %v727 = vmul.f32 %v725, %v719
    %v728 = vmul.f32 %v725, %v720
    %v730 = vlaneseq
    %v731 = vshrl.u32 %v730, 7
    %v732 = vsub.s32 0, %v731
    %v733 = vrot.slane %v680, %v732
    %v735 = vadd.f32 %v727, %v733
    %v736 = vadd.f32 %v728, %v733
    %v737 = vld [vmem:[%s12] sm:$0x1]
    %vm740 = vcmask 1040384
    %v741 = vrot.slane %v735, 7
    %v742 = vrot.slane %v736, 7
    %v743 = vsel %vm740, %v741, %v742
    %v746 = vsel %vm740, 0.0, %v741
    %748 = vset.pattern.permute.xlu0 0
    %749 = vperm.xlu0 %748, %v675
    %v750 = vpop.permute.xlu0 %749
    %753 = vset.pattern.permute.xlu0 0
    %754 = vperm.xlu0 %753, %v676
    %v755 = vpop.permute.xlu0 %754
    %v757 = vmul.f32 %v746, %v750
    %v758 = vmul.f32 %v743, %v755
    %vm759 = vcmask 1046528
    %v760 = vrot.slane %v735, 1
    %v761 = vrot.slane %v736, 1
    %v762 = vsel %vm759, %v760, %v761
    %v765 = vsel %vm759, %v761, 0.0
    %767 = vset.pattern.permute.xlu0 0
    %768 = vperm.xlu0 %767, %v677
    %v769 = vpop.permute.xlu0 %768
    %772 = vset.pattern.permute.xlu0 0
    %773 = vperm.xlu0 %772, %v678
    %v774 = vpop.permute.xlu0 %773
    %v776 = vmul.f32 %v762, %v769
    %v777 = vmul.f32 %v765, %v774
    %778 = vrot.lane.b32.xlu0 %v735, 32
    %v779 = vpop.permute.xlu0 %778
    %780 = vrot.lane.b32.xlu0 %v736, 32
    %v781 = vpop.permute.xlu0 %780
    %786 = vrot.lane.b32.xlu0 %v776, 64
    %v787 = vpop.permute.xlu0 %786
    %788 = vrot.lane.b32.xlu0 %v777, 64
    %v789 = vpop.permute.xlu0 %788
    %v792 = vsel %vm88, %v757, %v779
    %v793 = vsel %vm88, %v758, %v781
    %vm794 = vcmask 523264
    %v795 = vsel %vm794, %v792, %v787
    %v796 = vsel %vm794, %v793, %v789
    %v797 = vpack.c.bf16 %v796, %v795
    %v798 = vld [vmem:[%s11] sm:$0xf]
    %v799 = vld [vmem:[%s11 + $0x4] sm:$0xf]
    %v800 = vld [vmem:[%s11 + $0x8] sm:$0xf]
    %v801 = vld [vmem:[%s11 + $0xc] sm:$0xf]
    %v802 = vld [vmem:[%s11 + $0x10] sm:$0xf]
    %v803 = vld [vmem:[%s11 + $0x14] sm:$0xf]
    %v804 = vld [vmem:[%s11 + $0x18] sm:$0xf]
    %v805 = vld [vmem:[%s11 + $0x1c] sm:$0xf]
    %v806 = vld [vmem:[%s11 + $0x20] sm:$0xf]
    %v807 = vld [vmem:[%s11 + $0x24] sm:$0xf]
    %v808 = vld [vmem:[%s11 + $0x28] sm:$0xf]
    %v809 = vld [vmem:[%s11 + $0x2c] sm:$0xf]
    %v822 = vunpack.c.l.b16 %v798
    %v823 = vunpack.c.l.b16 %v799
    %v824 = vunpack.c.l.b16 %v800
    %v825 = vunpack.c.l.b16 %v801
    %v826 = vunpack.c.l.b16 %v802
    %v827 = vunpack.c.l.b16 %v803
    %v828 = vunpack.c.l.b16 %v804
    %v829 = vunpack.c.l.b16 %v805
    %v830 = vunpack.c.l.b16 %v806
    %v831 = vunpack.c.l.b16 %v807
    %v832 = vunpack.c.l.b16 %v808
    %v833 = vunpack.c.l.b16 %v809
    %v834 = vpack.c.b16 %v823, %v822
    %v835 = vpack.c.b16 %v825, %v824
    %v836 = vpack.c.b16 %v827, %v826
    %v837 = vpack.c.b16 %v829, %v828
    %v838 = vpack.c.b16 %v831, %v830
    %v839 = vpack.c.b16 %v833, %v832
    %vm846 = vcmask 785408
    %v848 = vsel %vm846, %v797, 0
    %850 = vmatprep.subr.bf16.mxu0 0
    %851 = vmatpush1.bf16.msra.mxu0 %v834
    %852 = vmatprep.subr.bf16.mxu0 0
    %853 = vmatpush1.bf16.msra.mxu0 %v835
    %854 = vmatprep.subr.bf16.mxu0 0
    %855 = vmatpush1.bf16.msra.mxu0 %v836
    %856 = vmatprep.subr.bf16.mxu0 0
    %857 = vmatpush1.bf16.msra.mxu0 %v837
    %858 = vmatprep.subr.bf16.mxu0 0
    %859 = vmatpush1.bf16.msra.mxu0 %v838
    %860 = vmatprep.subr.bf16.mxu0 0
    %861 = vmatpush1.bf16.msra.mxu0 %v839
    %862 = vmatprep.subr.bf16.mxu0 0
    %863 = vmatpush1.bf16.msra.mxu0 0
    %864 = vmatprep.subr.bf16.mxu0 0
    %865 = vmatpush1.bf16.msra.mxu0 0
    %866 = vmatprep.subr.bf16.mxu0 0
    %867 = vmatpush1.bf16.msra.mxu0 0
    %868 = vmatprep.subr.bf16.mxu0 0
    %869 = vmatpush1.bf16.msra.mxu0 0
    %870 = vmatprep.subr.bf16.mxu0 0
    %871 = vmatpush1.bf16.msra.mxu0 0
    %872 = vmatprep.subr.bf16.mxu0 0
    %873 = vmatpush1.bf16.msra.mxu0 0
    %874 = vmatprep.subr.bf16.mxu0 0
    %875 = vmatpush1.bf16.msra.mxu0 0
    %876 = vmatprep.subr.bf16.mxu0 0
    %877 = vmatpush1.bf16.msra.mxu0 0
    %878 = vmatprep.subr.bf16.mxu0 0
    %879 = vmatpush1.bf16.msra.mxu0 0
    %880 = vmatprep.subr.bf16.mxu0 0
    %881 = vmatpush1.bf16.msra.mxu0 0
    %882 = vmatprep.mubr.bf16.mxu0 0
    %883 = vmatmul.mubr.bf16.gmra.mrb[0].mxu0 %v848
    %v884 = vpop.f32.mrb[0].mxu0
    %v885 = vadd.f32 0.0, %v884
    %v886 = vpop.f32.mrb[0].mxu0
    %v887 = vpop.f32.mrb[0].mxu0
    %v888 = vadd.f32 0.0, %v887
    %v889 = vpop.f32.mrb[0].mxu0
    %890 = vdwg.mxu0
    %v892 = vlaneseq
    %v893 = vshrl.u32 %v892, 7
    %v894 = vsub.s32 0, %v893
    %v895 = vrot.slane %v737, %v894
    %v897 = vadd.f32 %v895, %v885
    %v898 = vadd.f32 %v895, %v888
    %v899 = vmax.f32 %v897, 0.0
    %v900 = vmax.f32 %v898, 0.0
    %v901 = vld [vmem:[%s14] sm:$0x1]
    %v904 = vrot.slane %v899, 7
    %v905 = vrot.slane %v900, 7
    %v906 = vsel %vm740, %v904, %v905
    %v909 = vsel %vm740, 0.0, %v904
    %v910 = vmul.f32 %v909, %v750
    %v911 = vmul.f32 %v906, %v755
    %v912 = vrot.slane %v899, 1
    %v913 = vrot.slane %v900, 1
    %v914 = vsel %vm759, %v912, %v913
    %v917 = vsel %vm759, %v913, 0.0
    %v918 = vmul.f32 %v914, %v769
    %v919 = vmul.f32 %v917, %v774
    %920 = vrot.lane.b32.xlu0 %v899, 64
    %v921 = vpop.permute.xlu0 %920
    %922 = vrot.lane.b32.xlu0 %v900, 64
    %v923 = vpop.permute.xlu0 %922
    %v926 = vsel %vm794, %v910, %v921
    %v927 = vsel %vm794, %v911, %v923
    %v928 = vpack.c.bf16 %v927, %v926
    %v929 = vpack.c.bf16 %v919, %v918
    %v930 = vld [vmem:[%s13] sm:$0xf]
    %v931 = vld [vmem:[%s13 + $0x4] sm:$0xf]
    %v932 = vld [vmem:[%s13 + $0x8] sm:$0xf]
    %v933 = vld [vmem:[%s13 + $0xc] sm:$0xf]
    %v934 = vld [vmem:[%s13 + $0x10] sm:$0xf]
    %v935 = vld [vmem:[%s13 + $0x14] sm:$0xf]
    %v936 = vld [vmem:[%s13 + $0x18] sm:$0xf]
    %v937 = vld [vmem:[%s13 + $0x1c] sm:$0xf]
    %v938 = vld [vmem:[%s13 + $0x20] sm:$0xf]
    %v939 = vld [vmem:[%s13 + $0x24] sm:$0xf]
    %v940 = vld [vmem:[%s13 + $0x28] sm:$0xf]
    %v941 = vld [vmem:[%s13 + $0x2c] sm:$0xf]
    %v942 = vld [vmem:[%s13 + $0x30] sm:$0xf]
    %v943 = vld [vmem:[%s13 + $0x34] sm:$0xf]
    %v944 = vld [vmem:[%s13 + $0x38] sm:$0xf]
    %v945 = vld [vmem:[%s13 + $0x3c] sm:$0xf]
    %v946 = vld [vmem:[%s13 + $0x40] sm:$0xf]
    %v947 = vld [vmem:[%s13 + $0x44] sm:$0xf]
    %v948 = vld [vmem:[%s13 + $0x48] sm:$0xf]
    %v949 = vld [vmem:[%s13 + $0x4c] sm:$0xf]
    %v950 = vld [vmem:[%s13 + $0x50] sm:$0xf]
    %v951 = vld [vmem:[%s13 + $0x54] sm:$0xf]
    %v952 = vld [vmem:[%s13 + $0x58] sm:$0xf]
    %v953 = vld [vmem:[%s13 + $0x5c] sm:$0xf]
    %v978 = vunpack.c.l.b16 %v930
    %v979 = vunpack.c.l.b16 %v931
    %v980 = vunpack.c.l.b16 %v932
    %v981 = vunpack.c.l.b16 %v933
    %v982 = vunpack.c.l.b16 %v934
    %v983 = vunpack.c.l.b16 %v935
    %v984 = vunpack.c.l.b16 %v936
    %v985 = vunpack.c.l.b16 %v937
    %v986 = vunpack.c.l.b16 %v938
    %v987 = vunpack.c.l.b16 %v939
    %v988 = vunpack.c.l.b16 %v940
    %v989 = vunpack.c.l.b16 %v941
    %v990 = vunpack.c.l.b16 %v942
    %v991 = vunpack.c.l.b16 %v943
    %v992 = vunpack.c.l.b16 %v944
    %v993 = vunpack.c.l.b16 %v945
    %v994 = vunpack.c.l.b16 %v946
    %v995 = vunpack.c.l.b16 %v947
    %v996 = vunpack.c.l.b16 %v948
    %v997 = vunpack.c.l.b16 %v949
    %v998 = vunpack.c.l.b16 %v950
    %v999 = vunpack.c.l.b16 %v951
    %v1000 = vunpack.c.l.b16 %v952
    %v1001 = vunpack.c.l.b16 %v953
    %v1002 = vpack.c.b16 %v979, %v978
    %v1003 = vpack.c.b16 %v981, %v980
    %v1004 = vpack.c.b16 %v983, %v982
    %v1005 = vpack.c.b16 %v985, %v984
    %v1006 = vpack.c.b16 %v987, %v986
    %v1007 = vpack.c.b16 %v989, %v988
    %v1008 = vpack.c.b16 %v991, %v990
    %v1009 = vpack.c.b16 %v993, %v992
    %v1010 = vpack.c.b16 %v995, %v994
    %v1011 = vpack.c.b16 %v997, %v996
    %v1012 = vpack.c.b16 %v999, %v998
    %v1013 = vpack.c.b16 %v1001, %v1000
    %v1027 = vsel %vm794, %v929, 0
    %1029 = vmatprep.subr.bf16.mxu0 0
    %1030 = vmatpush1.bf16.msra.mxu0 %v1002
    %1031 = vmatprep.subr.bf16.mxu0 0
    %1032 = vmatpush1.bf16.msra.mxu0 %v1003
    %1033 = vmatprep.subr.bf16.mxu0 0
    %1034 = vmatpush1.bf16.msra.mxu0 %v1004
    %1035 = vmatprep.subr.bf16.mxu0 0
    %1036 = vmatpush1.bf16.msra.mxu0 %v1005
    %1037 = vmatprep.subr.bf16.mxu0 0
    %1038 = vmatpush1.bf16.msra.mxu0 %v1006
    %1039 = vmatprep.subr.bf16.mxu0 0
    %1040 = vmatpush1.bf16.msra.mxu0 %v1007
    %1041 = vmatprep.subr.bf16.mxu0 0
    %1042 = vmatpush1.bf16.msra.mxu0 %v1008
    %1043 = vmatprep.subr.bf16.mxu0 0
    %1044 = vmatpush1.bf16.msra.mxu0 %v1009
    %1045 = vmatprep.subr.bf16.mxu0 0
    %1046 = vmatpush1.bf16.msra.mxu0 %v1010
    %1047 = vmatprep.subr.bf16.mxu0 0
    %1048 = vmatpush1.bf16.msra.mxu0 %v1011
    %1049 = vmatprep.subr.bf16.mxu0 0
    %1050 = vmatpush1.bf16.msra.mxu0 %v1012
    %1051 = vmatprep.subr.bf16.mxu0 0
    %1052 = vmatpush1.bf16.msra.mxu0 %v1013
    %1053 = vmatprep.subr.bf16.mxu0 0
    %1054 = vmatpush1.bf16.msra.mxu0 0
    %1055 = vmatprep.subr.bf16.mxu0 0
    %1056 = vmatpush1.bf16.msra.mxu0 0
    %1057 = vmatprep.subr.bf16.mxu0 0
    %1058 = vmatpush1.bf16.msra.mxu0 0
    %1059 = vmatprep.subr.bf16.mxu0 0
    %1060 = vmatpush1.bf16.msra.mxu0 0
    %1061 = vmatprep.mubr.bf16.mxu0 %v1027
    %1062 = vmatmul.mubr.bf16.gmra.mrb[0].mxu0 %v928
    %v1063 = vpop.f32.mrb[0].mxu0
    %v1064 = vadd.f32 0.0, %v1063
    %v1065 = vpop.f32.mrb[0].mxu0
    %v1066 = vpop.f32.mrb[0].mxu0
    %v1067 = vadd.f32 0.0, %v1066
    %v1068 = vpop.f32.mrb[0].mxu0
    %1069 = vdwg.mxu0
    %v1071 = vlaneseq
    %v1072 = vshrl.u32 %v1071, 7
    %v1073 = vsub.s32 0, %v1072
    %v1074 = vrot.slane %v901, %v1073
    %v1076 = vadd.f32 %v1074, %v1064
    %v1077 = vadd.f32 %v1074, %v1067
    %v1078 = vadd.f32 %v673, %v1076
    %v1079 = vadd.f32 %v674, %v1077
    %v1080 = vld [vmem:[%s15] sm:$0x1]
    %v1081 = vld [vmem:[%s16] sm:$0x1]
    %v1082 = vsel %vm88, %v1078, 0.0
    %1083 = vadd.xlane.f32.xlu0 %v1082
    %v1084 = vpop.xlane.xlu0 %1083
    %v1085 = vsel %vm88, %v1079, 0.0
    %1086 = vadd.xlane.f32.xlu0 %v1085
    %v1087 = vpop.xlane.xlu0 %1086
    %v1088 = vmul.f32 %v1084, %v158
    %v1089 = vmul.f32 %v1087, %v158
    %v1090 = vsub.f32 %v1078, %v1088
    %v1091 = vsub.f32 %v1079, %v1089
    %v1092 = vmul.f32 %v1090, %v1090
    %v1093 = vmul.f32 %v1091, %v1091
    %v1094 = vsel %vm88, %v1092, 0.0
    %1095 = vadd.xlane.f32.xlu0 %v1094
    %v1096 = vpop.xlane.xlu0 %1095
    %v1097 = vsel %vm88, %v1093, 0.0
    %1098 = vadd.xlane.f32.xlu0 %v1097
    %v1099 = vpop.xlane.xlu0 %1098
    %v1100 = vmul.f32 %v1096, 0.032258064
    %v1101 = vmul.f32 %v1099, 0.032258064
    %v1102 = vrsqrt.pop %v1100
    %v1103 = vmul.f32 %v1100, %v1102
    %vm1104 = vcmp.eq.f32.partialorder %v1100, inf
    %v1105 = vsel %vm1104, %v1100, %v1103
    %vm1106 = vcmp.eq.f32.partialorder %v1100, 0.0
    %v1107 = vand.u32 %v1100, 2147483648
    %v1108 = vsel %vm1106, %v1107, %v1105
    %v1109 = vrsqrt.pop %v1101
    %v1110 = vmul.f32 %v1101, %v1109
    %vm1111 = vcmp.eq.f32.partialorder %v1101, inf
    %v1112 = vsel %vm1111, %v1101, %v1110
    %vm1113 = vcmp.eq.f32.partialorder %v1101, 0.0
    %v1114 = vand.u32 %v1101, 2147483648
    %v1115 = vsel %vm1113, %v1114, %v1112
    %v1116 = vadd.f32 %v1108, 1e-06
    %v1117 = vadd.f32 %v1115, 1e-06
    %v1118 = vrcp.pop %v1116
    %v1119 = vrcp.pop %v1117
    %v1120 = vmul.f32 %v1090, %v1118
    %v1121 = vmul.f32 %v1091, %v1119
    %v1123 = vlaneseq
    %v1124 = vshrl.u32 %v1123, 7
    %v1125 = vsub.s32 0, %v1124
    %v1126 = vrot.slane %v1080, %v1125
    %v1128 = vmul.f32 %v1126, %v1120
    %v1129 = vmul.f32 %v1126, %v1121
    %v1131 = vlaneseq
    %v1132 = vshrl.u32 %v1131, 7
    %v1133 = vsub.s32 0, %v1132
    %v1134 = vrot.slane %v1081, %v1133
    %v1136 = vadd.f32 %v1128, %v1134
    %v1137 = vadd.f32 %v1129, %v1134
    %v1138 = vsel %vm88, %v1136, 0.0
    %v1139 = vsel %vm88, %v1137, 0.0
    %1140 = vst [vmem:[#allocation2] sm:$0xff] %v1138
    %1141 = vst [vmem:[#allocation2 + $0x8] sm:$0xff] %v1139
    // Predicated region
    $region70: #{tpu_custom_call.1} parent=1 // pred_check
      _
    $region71: #{tpu_custom_call.1} parent=1 // pred_check_branch
      %1143 = sbr.rel (0) target = $region73
    $region72: #{tpu_custom_call.1} parent=1 // pred_region
      %s1145 = ssub.s32 256, 256
      %1146 = vsyncadd [#allocation3], %s1145
      %s1147 = sshll.u32 [#allocation2], 4
      %s1148 = int_to_ptr.vmem [resolvable:$true] %s1147
      %1153 = dma.vmem_to_hbm [thread:$0]  %s1148, 256, %s17, [#allocation3], 128, 128, 8
    $region73: #{tpu_custom_call.1} parent=1 // pred_fallthru
      _
    // Predicated region
    $region74: #{tpu_custom_call.1} parent=1 // pred_check
      _
    $region75: #{tpu_custom_call.1} parent=1 // pred_check_branch
      %1155 = sbr.rel (0) target = $region77
    $region76: #{tpu_custom_call.1} parent=1 // pred_region
      %1156 = dma.done [#allocation3], 256
    $region77: #{tpu_custom_call.1} parent=1 // pred_fallthru
      _
    %1157 = vsyncpa [#allocation3], 1

</llo_original>
